<compile_context>
chip_gen: v7x
topology: tpu7x:2x2x1
jax: 0.10.0
libtpu: 0.0.40
codegen_flags: <defaults>
</compile_context>

<pallas_src>
import functools
import math

import jax
import jax.numpy as jnp
from jax.experimental import pallas as pl
from jax.experimental.pallas import tpu as pltpu


def _layer_norm(x, eps=1e-5):
    mu = jnp.mean(x, axis=-1, keepdims=True)
    var = jnp.mean((x - mu) ** 2, axis=-1, keepdims=True)
    return (x - mu) * jax.lax.rsqrt(var + eps)


# ---------------------------------------------------------------------------
# Fused EncoderLayer kernel for one (batch element, query tile):
#   QKV projections -> per-head attention -> fused output projection ->
#   LayerNorm(attn_out + x) -> FFN -> LayerNorm(x + ffn).
# Emits the layer output (tq, D) and self_attn (tq, H*d_v) already in its
# final lane-dense layout.
# ---------------------------------------------------------------------------
def encoder_layer_kernel(x_q_ref, x_kv_ref, mask_ref,
                         wq_ref, bq_ref, wk_ref, bk_ref, wv_ref, bv_ref,
                         wt_ref, bt_ref, w1_ref, b1_ref, w2_ref, b2_ref,
                         out_ref, attn_ref,
                         k_scr, v_scr,
                         *, n_heads, d_k, d_v):
    f32 = jnp.float32
    bf16 = jnp.bfloat16

    # K / V projections once per batch element (first query tile only);
    # bf16 scratch persists across the "arbitrary" query-tile grid axis.
    @pl.when(pl.program_id(1) == 0)
    def _():
        xkv = x_kv_ref[0].astype(bf16)                               # (S, D)
        k = jnp.dot(xkv, wk_ref[...], preferred_element_type=f32) + bk_ref[...]
        v = jnp.dot(xkv, wv_ref[...], preferred_element_type=f32) + bv_ref[...]
        k_scr[...] = k.astype(bf16)                                  # (S, H*d_k)
        v_scr[...] = v.astype(bf16)                                  # (S, H*d_v)

    x = x_q_ref[0]                                                   # (tq, D) f32
    xb = x.astype(bf16)

    # Lane-dense Q projection; fold 1/sqrt(d_k) into Q (cheaper than scaling scores).
    scale = 1.0 / math.sqrt(d_k)
    q = (jnp.dot(xb, wq_ref[...], preferred_element_type=f32) + bq_ref[...]) * scale
    qb = q.astype(bf16)                                              # (tq, H*d_k)

    mask_row = mask_ref[0]                                           # (1, S): 0 / -1e9

    # Per-head attention via static lane slices; only one head's (tq, S)
    # score tensor is live at a time, only (tq, d_v) per head is carried.
    ctx_heads = []
    for h in range(n_heads):
        qh = qb[:, h * d_k:(h + 1) * d_k]                            # (tq, d_k) bf16
        kh = k_scr[:, h * d_k:(h + 1) * d_k]                         # (S, d_k)  bf16
        vh = v_scr[:, h * d_v:(h + 1) * d_v]                         # (S, d_v)  bf16
        s = jax.lax.dot_general(qh, kh, (((1,), (1,)), ((), ())),
                                preferred_element_type=f32)          # (tq, S)
        s = s + mask_row
        s = s - jnp.max(s, axis=-1, keepdims=True)
        p = jnp.exp(s)
        p = p * pl.reciprocal(jnp.sum(p, axis=-1, keepdims=True), approx=True)
        ctx_heads.append(jnp.dot(p.astype(bf16), vh,
                                 preferred_element_type=f32))        # (tq, d_v)
    ctx = jnp.concatenate(ctx_heads, axis=-1)                        # (tq, H*d_v) f32

    # self_attn already in its final (B, S, H*d_v) layout -> lane-dense store.
    attn_ref[0] = ctx

    # Output projection fused across heads: (tq, H*d_v) @ (H*d_v, D).
    attn_out = jnp.dot(ctx.astype(bf16), wt_ref[...],
                       preferred_element_type=f32) + bt_ref[...]
    y = _layer_norm(attn_out + x)                # LayerNorm(attn_output + residual)

    # FFN + final LayerNorm (residual is the *layer input*).
    h1 = jnp.maximum(jnp.dot(y.astype(bf16), w1_ref[...],
                             preferred_element_type=f32) + b1_ref[...], 0.0)
    ffn = jnp.dot(h1.astype(bf16), w2_ref[...],
                  preferred_element_type=f32) + b2_ref[...]
    out_ref[0] = _layer_norm(x + ffn)


# Generation-aware VMEM limit: ~3/4 of physical, capped at 96 MiB
# (96 MiB on 128 MiB v5e/v6e, 48 MiB on 64 MiB v7x).
_VMEM_LIMIT = None


def _vmem_limit_bytes():
    global _VMEM_LIMIT
    if _VMEM_LIMIT is None:
        try:
            cap = int(pltpu.get_tpu_info().vmem_capacity_bytes)
        except Exception:
            cap = 64 * 1024 * 1024          # conservative fallback (safe on v7x)
        _VMEM_LIMIT = max(32 * 1024 * 1024, min((cap * 3) // 4, 96 * 1024 * 1024))
    return _VMEM_LIMIT


def encoder_layer_forward(params, inputs_emb, key_pad_mask, *,
                          n_heads, d_k, d_v, q_tile=128):
    """EncoderLayer.forward.

    inputs_emb:   (B, S, d_model) float32
    key_pad_mask: (B, S) bool, True where the KEY token is padding (the
                  reference's pad_attn_mask is exactly this row broadcast to
                  (B, S, S) by get_attn_pad_mask).
    Returns (LayerNorm(inputs_emb + FFN(...)), self_attn) like the PyTorch module.
    """
    B, S, D = inputs_emb.shape
    HDk = n_heads * d_k
    HDv = n_heads * d_v
    d_ff = params["w1"].shape[1]

    tq = S if S <= q_tile else q_tile
    assert S % tq == 0, "sequence length must be divisible by the query tile"
    nq = S // tq

    # Additive mask row: 0 for real keys, -1e9 for padded keys. (B, 1, S)
    add_mask = (key_pad_mask.astype(jnp.float32) * jnp.float32(-1e9))[:, None, :]

    kern = functools.partial(encoder_layer_kernel,
                             n_heads=n_heads, d_k=d_k, d_v=d_v)

    # Weights / biases: whole-array VMEM residents (single-buffered invariants).
    vmem_spec = pl.BlockSpec(memory_space=pltpu.MemorySpace.VMEM)

    out, self_attn = pl.pallas_call(
        kern,
        out_shape=(jax.ShapeDtypeStruct((B, S, D), jnp.float32),
                   jax.ShapeDtypeStruct((B, S, HDv), jnp.float32)),
        grid=(B, nq),
        in_specs=[
            pl.BlockSpec((1, tq, D), lambda b, qi: (b, qi, 0)),   # query rows
            pl.BlockSpec((1, S, D), lambda b, qi: (b, 0, 0)),     # full seq for K/V
            pl.BlockSpec((1, 1, S), lambda b, qi: (b, 0, 0)),     # additive mask row
        ] + [vmem_spec] * 12,
        out_specs=(pl.BlockSpec((1, tq, D), lambda b, qi: (b, qi, 0)),
                   pl.BlockSpec((1, tq, HDv), lambda b, qi: (b, qi, 0))),
        scratch_shapes=[pltpu.VMEM((S, HDk), jnp.bfloat16),        # K cache
                        pltpu.VMEM((S, HDv), jnp.bfloat16)],       # V cache
        compiler_params=pltpu.CompilerParams(
            dimension_semantics=("parallel", "arbitrary"),
            vmem_limit_bytes=_vmem_limit_bytes()),
    )(inputs_emb, inputs_emb, add_mask,
      params["wq"], params["bq"], params["wk"], params["bk"],
      params["wv"], params["bv"], params["wt"], params["bt"],
      params["w1"], params["b1"], params["w2"], params["b2"])

    return out, self_attn


# ---------------------------------------------------------------------------
# Parameter construction (kernel-ready layout: fused (D, H*d_k)-style weights,
# bf16 weights, f32 biases).  Column grouping matches the reference
# .view(B, S, H, d)/transpose head split and the (H*d_v -> d_model) trans_layer.
# ---------------------------------------------------------------------------
def init_params(key, *, d_model, n_heads, d_k, d_v, d_ff):
    def dense(k, fan_in, out_dim):
        kw, kb = jax.random.split(k)
        w = jax.random.normal(kw, (fan_in, out_dim), jnp.float32) / math.sqrt(fan_in)
        b = jax.random.normal(kb, (1, out_dim), jnp.float32) * 0.02
        return w, b

    ks = jax.random.split(key, 6)
    wq, bq = dense(ks[0], d_model, n_heads * d_k)
    wk, bk = dense(ks[1], d_model, n_heads * d_k)
    wv, bv = dense(ks[2], d_model, n_heads * d_v)
    wt, bt = dense(ks[3], n_heads * d_v, d_model)
    w1, b1 = dense(ks[4], d_model, d_ff)
    w2, b2 = dense(ks[5], d_ff, d_model)

    bf16 = jnp.bfloat16
    return dict(
        wq=wq.astype(bf16), bq=bq, wk=wk.astype(bf16), bk=bk,
        wv=wv.astype(bf16), bv=bv, wt=wt.astype(bf16), bt=bt,
        w1=w1.astype(bf16), b1=b1, w2=w2.astype(bf16), b2=b2,
    )


# Pure-JAX reference (f32 math on the same bf16-rounded weights).
def encoder_layer_reference(params, x, key_pad_mask, *, n_heads, d_k, d_v):
    f32 = jnp.float32
    wq, bq = params["wq"].astype(f32), params["bq"]
    wk, bk = params["wk"].astype(f32), params["bk"]
    wv, bv = params["wv"].astype(f32), params["bv"]
    wt, bt = params["wt"].astype(f32), params["bt"]
    w1, b1 = params["w1"].astype(f32), params["b1"]
    w2, b2 = params["w2"].astype(f32), params["b2"]
    B, S, _ = x.shape
    q = (x @ wq + bq).reshape(B, S, n_heads, d_k).transpose(0, 2, 1, 3)
    k = (x @ wk + bk).reshape(B, S, n_heads, d_k).transpose(0, 2, 1, 3)
    v = (x @ wv + bv).reshape(B, S, n_heads, d_v).transpose(0, 2, 1, 3)
    s = jnp.einsum('bhqd,bhkd->bhqk', q, k) / math.sqrt(d_k)
    s = jnp.where(key_pad_mask[:, None, None, :], -1e9, s)
    p = jax.nn.softmax(s, axis=-1)
    self_attn = jnp.einsum('bhqk,bhkd->bhqd', p, v)
    self_attn = self_attn.transpose(0, 2, 1, 3).reshape(B, S, n_heads * d_v)
    y = _layer_norm(self_attn @ wt + bt + x)
    ffn = jnp.maximum(y @ w1 + b1, 0.0) @ w2 + b2
    return _layer_norm(x + ffn), self_attn


if __name__ == "__main__":
    d_model, n_heads, d_k, d_v, d_ff = 32, 2, 16, 16, 64
    B, S = 2, 8

    key = jax.random.PRNGKey(0)
    pkey, xkey = jax.random.split(key)
    params = init_params(pkey, d_model=d_model, n_heads=n_heads,
                         d_k=d_k, d_v=d_v, d_ff=d_ff)

    inputs_emb = jax.random.normal(xkey, (B, S, d_model), jnp.float32)
    # Key-padding mask (True = padding); batch element 1 has 2 padded tokens.
    key_pad_mask = jnp.zeros((B, S), jnp.bool_).at[1, -2:].set(True)

    fwd = jax.jit(functools.partial(encoder_layer_forward,
                                    n_heads=n_heads, d_k=d_k, d_v=d_v))
    out, self_attn = fwd(params, inputs_emb, key_pad_mask)
    jax.block_until_ready(out)
    jax.block_until_ready(self_attn)

    assert out.shape == (B, S, d_model)
    assert self_attn.shape == (B, S, n_heads * d_v)
    assert bool(jnp.all(jnp.isfinite(out)))
    assert bool(jnp.all(jnp.isfinite(self_attn)))

    # Tolerance-level agreement only (bf16 MXU + approx reciprocal).
    ref_out, ref_attn = encoder_layer_reference(params, inputs_emb, key_pad_mask,
                                                n_heads=n_heads, d_k=d_k, d_v=d_v)
    assert bool(jnp.allclose(out, ref_out, atol=5e-2, rtol=5e-2)), \
        float(jnp.max(jnp.abs(out - ref_out)))
    assert bool(jnp.allclose(self_attn, ref_attn, atol=5e-2, rtol=5e-2)), \
        float(jnp.max(jnp.abs(self_attn - ref_attn)))

    print("KERNEL_OK")
</pallas_src>

<mosaic_0001>
module attributes {stable_mosaic.version = 11 : i64} {
  func.func @encoder_layer_kernel(%arg0: i32, %arg1: i32, %arg2: memref<1x8x32xf32, #tpu.memory_space<vmem>>, %arg3: memref<1x8x32xf32, #tpu.memory_space<vmem>>, %arg4: memref<1x1x8xf32, #tpu.memory_space<vmem>>, %arg5: memref<32x32xbf16, #tpu.memory_space<vmem>>, %arg6: memref<1x32xf32, #tpu.memory_space<vmem>>, %arg7: memref<32x32xbf16, #tpu.memory_space<vmem>>, %arg8: memref<1x32xf32, #tpu.memory_space<vmem>>, %arg9: memref<32x32xbf16, #tpu.memory_space<vmem>>, %arg10: memref<1x32xf32, #tpu.memory_space<vmem>>, %arg11: memref<32x32xbf16, #tpu.memory_space<vmem>>, %arg12: memref<1x32xf32, #tpu.memory_space<vmem>>, %arg13: memref<32x64xbf16, #tpu.memory_space<vmem>>, %arg14: memref<1x64xf32, #tpu.memory_space<vmem>>, %arg15: memref<64x32xbf16, #tpu.memory_space<vmem>>, %arg16: memref<1x32xf32, #tpu.memory_space<vmem>>, %arg17: memref<1x8x32xf32, #tpu.memory_space<vmem>>, %arg18: memref<1x8x32xf32, #tpu.memory_space<vmem>>, %arg19: memref<8x32xbf16, #tpu.memory_space<vmem>>, %arg20: memref<8x32xbf16, #tpu.memory_space<vmem>>) attributes {dimension_semantics = [#tpu.dimension_semantics<parallel>, #tpu.dimension_semantics<arbitrary>], iteration_bounds = array<i64: 2, 1>, scalar_prefetch = 0 : i64, scratch_operands = 2 : i64, tpu.core_type = #tpu.core_type<tc>, window_params = [{transform_indices = @transform_0, window_bounds = array<i64: 1, 8, 32>}, {transform_indices = @transform_1, window_bounds = array<i64: 1, 8, 32>}, {transform_indices = @transform_2, window_bounds = array<i64: 1, 1, 8>}, {pipeline_mode = #tpu.pipeline_mode<synchronous>, transform_indices = @transform_3, window_bounds = array<i64: 32, 32>}, {pipeline_mode = #tpu.pipeline_mode<synchronous>, transform_indices = @transform_4, window_bounds = array<i64: 1, 32>}, {pipeline_mode = #tpu.pipeline_mode<synchronous>, transform_indices = @transform_5, window_bounds = array<i64: 32, 32>}, {pipeline_mode = #tpu.pipeline_mode<synchronous>, transform_indices = @transform_6, window_bounds = array<i64: 1, 32>}, {pipeline_mode = #tpu.pipeline_mode<synchronous>, transform_indices = @transform_7, window_bounds = array<i64: 32, 32>}, {pipeline_mode = #tpu.pipeline_mode<synchronous>, transform_indices = @transform_8, window_bounds = array<i64: 1, 32>}, {pipeline_mode = #tpu.pipeline_mode<synchronous>, transform_indices = @transform_9, window_bounds = array<i64: 32, 32>}, {pipeline_mode = #tpu.pipeline_mode<synchronous>, transform_indices = @transform_10, window_bounds = array<i64: 1, 32>}, {pipeline_mode = #tpu.pipeline_mode<synchronous>, transform_indices = @transform_11, window_bounds = array<i64: 32, 64>}, {pipeline_mode = #tpu.pipeline_mode<synchronous>, transform_indices = @transform_12, window_bounds = array<i64: 1, 64>}, {pipeline_mode = #tpu.pipeline_mode<synchronous>, transform_indices = @transform_13, window_bounds = array<i64: 64, 32>}, {pipeline_mode = #tpu.pipeline_mode<synchronous>, transform_indices = @transform_14, window_bounds = array<i64: 1, 32>}, {transform_indices = @transform_15, window_bounds = array<i64: 1, 8, 32>}, {transform_indices = @transform_16, window_bounds = array<i64: 1, 8, 32>}]} {
    %c0_i32 = arith.constant 0 : i32
    %0 = arith.cmpi eq, %arg1, %c0_i32 : i32
    %1 = arith.extui %0 : i1 to i32
    %c0_i32_0 = arith.constant 0 : i32
    %2 = arith.cmpi ne, %1, %c0_i32_0 : i32
    scf.if %2 {
      %c0_58 = arith.constant 0 : index
      %c0_59 = arith.constant 0 : index
      %c0_60 = arith.constant 0 : index
      %117 = vector.load %arg3[%c0_58, %c0_59, %c0_60] : memref<1x8x32xf32, #tpu.memory_space<vmem>>, vector<1x8x32xf32>
      %118 = vector.shape_cast %117 : vector<1x8x32xf32> to vector<8x32xf32>
      %119 = arith.truncf %118 : vector<8x32xf32> to vector<8x32xbf16>
      %c0_61 = arith.constant 0 : index
      %c0_62 = arith.constant 0 : index
      %120 = vector.load %arg7[%c0_61, %c0_62] : memref<32x32xbf16, #tpu.memory_space<vmem>>, vector<32x32xbf16>
      %cst_63 = arith.constant dense<0.000000e+00> : vector<8x32xf32>
      %121 = tpu.matmul %119, %120, %cst_63 {dimension_numbers = #tpu.dot_dimension_numbers<[1], [0], [0], [1], [0, 0, 1, 1], [], []>} : vector<8x32xbf16>, vector<32x32xbf16>, vector<8x32xf32> -> vector<8x32xf32>
      %c0_64 = arith.constant 0 : index
      %c0_65 = arith.constant 0 : index
      %122 = vector.load %arg8[%c0_64, %c0_65] : memref<1x32xf32, #tpu.memory_space<vmem>>, vector<1x32xf32>
      %123 = vector.broadcast %122 : vector<1x32xf32> to vector<8x32xf32>
      %124 = arith.addf %121, %123 : vector<8x32xf32>
      %c0_66 = arith.constant 0 : index
      %c0_67 = arith.constant 0 : index
      %125 = vector.load %arg9[%c0_66, %c0_67] : memref<32x32xbf16, #tpu.memory_space<vmem>>, vector<32x32xbf16>
      %cst_68 = arith.constant dense<0.000000e+00> : vector<8x32xf32>
      %126 = tpu.matmul %119, %125, %cst_68 {dimension_numbers = #tpu.dot_dimension_numbers<[1], [0], [0], [1], [0, 0, 1, 1], [], []>} : vector<8x32xbf16>, vector<32x32xbf16>, vector<8x32xf32> -> vector<8x32xf32>
      %c0_69 = arith.constant 0 : index
      %c0_70 = arith.constant 0 : index
      %127 = vector.load %arg10[%c0_69, %c0_70] : memref<1x32xf32, #tpu.memory_space<vmem>>, vector<1x32xf32>
      %128 = vector.broadcast %127 : vector<1x32xf32> to vector<8x32xf32>
      %129 = arith.addf %126, %128 : vector<8x32xf32>
      %130 = arith.truncf %124 : vector<8x32xf32> to vector<8x32xbf16>
      %c0_71 = arith.constant 0 : index
      %c0_72 = arith.constant 0 : index
      %131 = vector.load %arg19[%c0_71, %c0_72] : memref<8x32xbf16, #tpu.memory_space<vmem>>, vector<8x32xbf16>
      tpu.vector_store %arg19[%c0_71, %c0_72], %130 {strides = array<i32>} : memref<8x32xbf16, #tpu.memory_space<vmem>>, vector<8x32xbf16>,
      %132 = arith.truncf %129 : vector<8x32xf32> to vector<8x32xbf16>
      %c0_73 = arith.constant 0 : index
      %c0_74 = arith.constant 0 : index
      %133 = vector.load %arg20[%c0_73, %c0_74] : memref<8x32xbf16, #tpu.memory_space<vmem>>, vector<8x32xbf16>
      tpu.vector_store %arg20[%c0_73, %c0_74], %132 {strides = array<i32>} : memref<8x32xbf16, #tpu.memory_space<vmem>>, vector<8x32xbf16>,
    } else {
    }
    %c0 = arith.constant 0 : index
    %c0_1 = arith.constant 0 : index
    %c0_2 = arith.constant 0 : index
    %3 = vector.load %arg2[%c0, %c0_1, %c0_2] : memref<1x8x32xf32, #tpu.memory_space<vmem>>, vector<1x8x32xf32>
    %4 = vector.shape_cast %3 : vector<1x8x32xf32> to vector<8x32xf32>
    %5 = arith.truncf %4 : vector<8x32xf32> to vector<8x32xbf16>
    %c0_3 = arith.constant 0 : index
    %c0_4 = arith.constant 0 : index
    %6 = vector.load %arg5[%c0_3, %c0_4] : memref<32x32xbf16, #tpu.memory_space<vmem>>, vector<32x32xbf16>
    %cst = arith.constant dense<0.000000e+00> : vector<8x32xf32>
    %7 = tpu.matmul %5, %6, %cst {dimension_numbers = #tpu.dot_dimension_numbers<[1], [0], [0], [1], [0, 0, 1, 1], [], []>} : vector<8x32xbf16>, vector<32x32xbf16>, vector<8x32xf32> -> vector<8x32xf32>
    %c0_5 = arith.constant 0 : index
    %c0_6 = arith.constant 0 : index
    %8 = vector.load %arg6[%c0_5, %c0_6] : memref<1x32xf32, #tpu.memory_space<vmem>>, vector<1x32xf32>
    %9 = vector.broadcast %8 : vector<1x32xf32> to vector<8x32xf32>
    %10 = arith.addf %7, %9 : vector<8x32xf32>
    %cst_7 = arith.constant 2.500000e-01 : f32
    %11 = vector.broadcast %cst_7 : f32 to vector<8x32xf32>
    %12 = arith.mulf %10, %11 : vector<8x32xf32>
    %13 = arith.truncf %12 : vector<8x32xf32> to vector<8x32xbf16>
    %c0_8 = arith.constant 0 : index
    %c0_9 = arith.constant 0 : index
    %c0_10 = arith.constant 0 : index
    %14 = vector.load %arg4[%c0_8, %c0_9, %c0_10] : memref<1x1x8xf32, #tpu.memory_space<vmem>>, vector<1x1x8xf32>
    %15 = vector.shape_cast %14 : vector<1x1x8xf32> to vector<1x8xf32>
    %16 = vector.extract_strided_slice %13 {offsets = [0, 0], sizes = [8, 16], strides = [1, 1]} : vector<8x32xbf16> to vector<8x16xbf16>
    %c0_11 = arith.constant 0 : index
    %c0_12 = arith.constant 0 : index
    %17 = vector.load %arg19[%c0_11, %c0_12] : memref<8x32xbf16, #tpu.memory_space<vmem>>, vector<8x16xbf16>
    %c0_13 = arith.constant 0 : index
    %c0_14 = arith.constant 0 : index
    %18 = vector.load %arg20[%c0_13, %c0_14] : memref<8x32xbf16, #tpu.memory_space<vmem>>, vector<8x16xbf16>
    %cst_15 = arith.constant dense<0.000000e+00> : vector<8x8xf32>
    %19 = tpu.matmul %16, %17, %cst_15 {dimension_numbers = #tpu.dot_dimension_numbers<[1], [1], [0], [0], [0, 0, 1, 0], [], []>} : vector<8x16xbf16>, vector<8x16xbf16>, vector<8x8xf32> -> vector<8x8xf32>
    %20 = vector.broadcast %15 : vector<1x8xf32> to vector<8x8xf32>
    %21 = arith.addf %19, %20 : vector<8x8xf32>
    %cst_16 = arith.constant dense<0xFF800000> : vector<8xf32>
    %22 = vector.multi_reduction <maximumf>, %21, %cst_16 [1] : vector<8x8xf32> to vector<8xf32>
    %23 = vector.shape_cast %22 : vector<8xf32> to vector<8x1xf32>
    %24 = vector.broadcast %23 : vector<8x1xf32> to vector<8x8xf32>
    %25 = arith.subf %21, %24 : vector<8x8xf32>
    %26 = math.exp %25 : vector<8x8xf32>
    %cst_17 = arith.constant dense<0.000000e+00> : vector<8xf32>
    %27 = vector.multi_reduction <add>, %26, %cst_17 [1] : vector<8x8xf32> to vector<8xf32>
    %28 = vector.shape_cast %27 : vector<8xf32> to vector<8x1xf32>
    %29 = tpu.reciprocal %28 {approx = true} : vector<8x1xf32> -> vector<8x1xf32>
    %30 = vector.broadcast %29 : vector<8x1xf32> to vector<8x8xf32>
    %31 = arith.mulf %26, %30 : vector<8x8xf32>
    %32 = arith.truncf %31 : vector<8x8xf32> to vector<8x8xbf16>
    %cst_18 = arith.constant dense<0.000000e+00> : vector<8x16xf32>
    %33 = tpu.matmul %32, %18, %cst_18 {dimension_numbers = #tpu.dot_dimension_numbers<[1], [0], [0], [1], [0, 0, 1, 1], [], []>} : vector<8x8xbf16>, vector<8x16xbf16>, vector<8x16xf32> -> vector<8x16xf32>
    %34 = vector.extract_strided_slice %13 {offsets = [0, 16], sizes = [8, 16], strides = [1, 1]} : vector<8x32xbf16> to vector<8x16xbf16>
    %c0_19 = arith.constant 0 : index
    %c16 = arith.constant 16 : index
    %35 = vector.load %arg19[%c0_19, %c16] : memref<8x32xbf16, #tpu.memory_space<vmem>>, vector<8x16xbf16>
    %c0_20 = arith.constant 0 : index
    %c16_21 = arith.constant 16 : index
    %36 = vector.load %arg20[%c0_20, %c16_21] : memref<8x32xbf16, #tpu.memory_space<vmem>>, vector<8x16xbf16>
    %cst_22 = arith.constant dense<0.000000e+00> : vector<8x8xf32>
    %37 = tpu.matmul %34, %35, %cst_22 {dimension_numbers = #tpu.dot_dimension_numbers<[1], [1], [0], [0], [0, 0, 1, 0], [], []>} : vector<8x16xbf16>, vector<8x16xbf16>, vector<8x8xf32> -> vector<8x8xf32>
    %38 = vector.broadcast %15 : vector<1x8xf32> to vector<8x8xf32>
    %39 = arith.addf %37, %38 : vector<8x8xf32>
    %cst_23 = arith.constant dense<0xFF800000> : vector<8xf32>
    %40 = vector.multi_reduction <maximumf>, %39, %cst_23 [1] : vector<8x8xf32> to vector<8xf32>
    %41 = vector.shape_cast %40 : vector<8xf32> to vector<8x1xf32>
    %42 = vector.broadcast %41 : vector<8x1xf32> to vector<8x8xf32>
    %43 = arith.subf %39, %42 : vector<8x8xf32>
    %44 = math.exp %43 : vector<8x8xf32>
    %cst_24 = arith.constant dense<0.000000e+00> : vector<8xf32>
    %45 = vector.multi_reduction <add>, %44, %cst_24 [1] : vector<8x8xf32> to vector<8xf32>
    %46 = vector.shape_cast %45 : vector<8xf32> to vector<8x1xf32>
    %47 = tpu.reciprocal %46 {approx = true} : vector<8x1xf32> -> vector<8x1xf32>
    %48 = vector.broadcast %47 : vector<8x1xf32> to vector<8x8xf32>
    %49 = arith.mulf %44, %48 : vector<8x8xf32>
    %50 = arith.truncf %49 : vector<8x8xf32> to vector<8x8xbf16>
    %cst_25 = arith.constant dense<0.000000e+00> : vector<8x16xf32>
    %51 = tpu.matmul %50, %36, %cst_25 {dimension_numbers = #tpu.dot_dimension_numbers<[1], [0], [0], [1], [0, 0, 1, 1], [], []>} : vector<8x8xbf16>, vector<8x16xbf16>, vector<8x16xf32> -> vector<8x16xf32>
    %52 = tpu.concatenate %33, %51 in 1 : vector<8x16xf32>, vector<8x16xf32> -> vector<8x32xf32>
    %c0_26 = arith.constant 0 : index
    %c0_27 = arith.constant 0 : index
    %c0_28 = arith.constant 0 : index
    %53 = vector.load %arg18[%c0_26, %c0_27, %c0_28] : memref<1x8x32xf32, #tpu.memory_space<vmem>>, vector<1x8x32xf32>
    %54 = vector.shape_cast %53 : vector<1x8x32xf32> to vector<8x32xf32>
    %55 = vector.shape_cast %52 : vector<8x32xf32> to vector<1x8x32xf32>
    tpu.vector_store %arg18[%c0_26, %c0_27, %c0_28], %55 {strides = array<i32>} : memref<1x8x32xf32, #tpu.memory_space<vmem>>, vector<1x8x32xf32>,
    %56 = arith.truncf %52 : vector<8x32xf32> to vector<8x32xbf16>
    %c0_29 = arith.constant 0 : index
    %c0_30 = arith.constant 0 : index
    %57 = vector.load %arg11[%c0_29, %c0_30] : memref<32x32xbf16, #tpu.memory_space<vmem>>, vector<32x32xbf16>
    %cst_31 = arith.constant dense<0.000000e+00> : vector<8x32xf32>
    %58 = tpu.matmul %56, %57, %cst_31 {dimension_numbers = #tpu.dot_dimension_numbers<[1], [0], [0], [1], [0, 0, 1, 1], [], []>} : vector<8x32xbf16>, vector<32x32xbf16>, vector<8x32xf32> -> vector<8x32xf32>
    %c0_32 = arith.constant 0 : index
    %c0_33 = arith.constant 0 : index
    %59 = vector.load %arg12[%c0_32, %c0_33] : memref<1x32xf32, #tpu.memory_space<vmem>>, vector<1x32xf32>
    %60 = vector.broadcast %59 : vector<1x32xf32> to vector<8x32xf32>
    %61 = arith.addf %58, %60 : vector<8x32xf32>
    %62 = arith.addf %61, %4 : vector<8x32xf32>
    %cst_34 = arith.constant dense<0.000000e+00> : vector<8xf32>
    %63 = vector.multi_reduction <add>, %62, %cst_34 [1] : vector<8x32xf32> to vector<8xf32>
    %64 = vector.shape_cast %63 : vector<8xf32> to vector<8x1xf32>
    %cst_35 = arith.constant 3.200000e+01 : f32
    %65 = vector.broadcast %cst_35 : f32 to vector<8x1xf32>
    %66 = arith.divf %64, %65 : vector<8x1xf32>
    %67 = vector.broadcast %66 : vector<8x1xf32> to vector<8x32xf32>
    %68 = arith.subf %62, %67 : vector<8x32xf32>
    %69 = arith.mulf %68, %68 : vector<8x32xf32>
    %cst_36 = arith.constant dense<0.000000e+00> : vector<8xf32>
    %70 = vector.multi_reduction <add>, %69, %cst_36 [1] : vector<8x32xf32> to vector<8xf32>
    %71 = vector.shape_cast %70 : vector<8xf32> to vector<8x1xf32>
    %cst_37 = arith.constant 3.200000e+01 : f32
    %72 = vector.broadcast %cst_37 : f32 to vector<8x1xf32>
    %73 = arith.divf %71, %72 : vector<8x1xf32>
    %74 = vector.broadcast %66 : vector<8x1xf32> to vector<8x32xf32>
    %75 = arith.subf %62, %74 : vector<8x32xf32>
    %cst_38 = arith.constant 9.99999974E-6 : f32
    %76 = vector.broadcast %cst_38 : f32 to vector<8x1xf32>
    %77 = arith.addf %73, %76 : vector<8x1xf32>
    %78 = math.rsqrt %77 : vector<8x1xf32>
    %79 = vector.broadcast %78 : vector<8x1xf32> to vector<8x32xf32>
    %80 = arith.mulf %75, %79 : vector<8x32xf32>
    %81 = arith.truncf %80 : vector<8x32xf32> to vector<8x32xbf16>
    %c0_39 = arith.constant 0 : index
    %c0_40 = arith.constant 0 : index
    %82 = vector.load %arg13[%c0_39, %c0_40] : memref<32x64xbf16, #tpu.memory_space<vmem>>, vector<32x64xbf16>
    %cst_41 = arith.constant dense<0.000000e+00> : vector<8x64xf32>
    %83 = tpu.matmul %81, %82, %cst_41 {dimension_numbers = #tpu.dot_dimension_numbers<[1], [0], [0], [1], [0, 0, 1, 1], [], []>} : vector<8x32xbf16>, vector<32x64xbf16>, vector<8x64xf32> -> vector<8x64xf32>
    %c0_42 = arith.constant 0 : index
    %c0_43 = arith.constant 0 : index
    %84 = vector.load %arg14[%c0_42, %c0_43] : memref<1x64xf32, #tpu.memory_space<vmem>>, vector<1x64xf32>
    %85 = vector.broadcast %84 : vector<1x64xf32> to vector<8x64xf32>
    %86 = arith.addf %83, %85 : vector<8x64xf32>
    %cst_44 = arith.constant 0.000000e+00 : f32
    %87 = vector.broadcast %cst_44 : f32 to vector<8x64xf32>
    %88 = arith.maximumf %86, %87 : vector<8x64xf32>
    %89 = arith.truncf %88 : vector<8x64xf32> to vector<8x64xbf16>
    %c0_45 = arith.constant 0 : index
    %c0_46 = arith.constant 0 : index
    %90 = vector.load %arg15[%c0_45, %c0_46] : memref<64x32xbf16, #tpu.memory_space<vmem>>, vector<64x32xbf16>
    %cst_47 = arith.constant dense<0.000000e+00> : vector<8x32xf32>
    %91 = tpu.matmul %89, %90, %cst_47 {dimension_numbers = #tpu.dot_dimension_numbers<[1], [0], [0], [1], [0, 0, 1, 1], [], []>} : vector<8x64xbf16>, vector<64x32xbf16>, vector<8x32xf32> -> vector<8x32xf32>
    %c0_48 = arith.constant 0 : index
    %c0_49 = arith.constant 0 : index
    %92 = vector.load %arg16[%c0_48, %c0_49] : memref<1x32xf32, #tpu.memory_space<vmem>>, vector<1x32xf32>
    %93 = vector.broadcast %92 : vector<1x32xf32> to vector<8x32xf32>
    %94 = arith.addf %91, %93 : vector<8x32xf32>
    %95 = arith.addf %4, %94 : vector<8x32xf32>
    %cst_50 = arith.constant dense<0.000000e+00> : vector<8xf32>
    %96 = vector.multi_reduction <add>, %95, %cst_50 [1] : vector<8x32xf32> to vector<8xf32>
    %97 = vector.shape_cast %96 : vector<8xf32> to vector<8x1xf32>
    %cst_51 = arith.constant 3.200000e+01 : f32
    %98 = vector.broadcast %cst_51 : f32 to vector<8x1xf32>
    %99 = arith.divf %97, %98 : vector<8x1xf32>
    %100 = vector.broadcast %99 : vector<8x1xf32> to vector<8x32xf32>
    %101 = arith.subf %95, %100 : vector<8x32xf32>
    %102 = arith.mulf %101, %101 : vector<8x32xf32>
    %cst_52 = arith.constant dense<0.000000e+00> : vector<8xf32>
    %103 = vector.multi_reduction <add>, %102, %cst_52 [1] : vector<8x32xf32> to vector<8xf32>
    %104 = vector.shape_cast %103 : vector<8xf32> to vector<8x1xf32>
    %cst_53 = arith.constant 3.200000e+01 : f32
    %105 = vector.broadcast %cst_53 : f32 to vector<8x1xf32>
    %106 = arith.divf %104, %105 : vector<8x1xf32>
    %107 = vector.broadcast %99 : vector<8x1xf32> to vector<8x32xf32>
    %108 = arith.subf %95, %107 : vector<8x32xf32>
    %cst_54 = arith.constant 9.99999974E-6 : f32
    %109 = vector.broadcast %cst_54 : f32 to vector<8x1xf32>
    %110 = arith.addf %106, %109 : vector<8x1xf32>
    %111 = math.rsqrt %110 : vector<8x1xf32>
    %112 = vector.broadcast %111 : vector<8x1xf32> to vector<8x32xf32>
    %113 = arith.mulf %108, %112 : vector<8x32xf32>
    %c0_55 = arith.constant 0 : index
    %c0_56 = arith.constant 0 : index
    %c0_57 = arith.constant 0 : index
    %114 = vector.load %arg17[%c0_55, %c0_56, %c0_57] : memref<1x8x32xf32, #tpu.memory_space<vmem>>, vector<1x8x32xf32>
    %115 = vector.shape_cast %114 : vector<1x8x32xf32> to vector<8x32xf32>
    %116 = vector.shape_cast %113 : vector<8x32xf32> to vector<1x8x32xf32>
    tpu.vector_store %arg17[%c0_55, %c0_56, %c0_57], %116 {strides = array<i32>} : memref<1x8x32xf32, #tpu.memory_space<vmem>>, vector<1x8x32xf32>,
    return
  }
  func.func @transform_0(%arg0: i32, %arg1: i32) -> (i32, i32, i32) {
    %c0_i32 = arith.constant 0 : i32
    %c0_i32_0 = arith.constant 0 : i32
    return %arg0, %arg1, %c0_i32 : i32, i32, i32
  }
  func.func @transform_1(%arg0: i32, %arg1: i32) -> (i32, i32, i32) {
    %c0_i32 = arith.constant 0 : i32
    %c0_i32_0 = arith.constant 0 : i32
    %c0_i32_1 = arith.constant 0 : i32
    return %arg0, %c0_i32, %c0_i32_0 : i32, i32, i32
  }
  func.func @transform_2(%arg0: i32, %arg1: i32) -> (i32, i32, i32) {
    %c0_i32 = arith.constant 0 : i32
    %c0_i32_0 = arith.constant 0 : i32
    %c0_i32_1 = arith.constant 0 : i32
    return %arg0, %c0_i32, %c0_i32_0 : i32, i32, i32
  }
  func.func @transform_3(%arg0: i32, %arg1: i32) -> (i32, i32) {
    %c0_i32 = arith.constant 0 : i32
    %c0_i32_0 = arith.constant 0 : i32
    %c0_i32_1 = arith.constant 0 : i32
    return %c0_i32, %c0_i32_0 : i32, i32
  }
  func.func @transform_4(%arg0: i32, %arg1: i32) -> (i32, i32) {
    %c0_i32 = arith.constant 0 : i32
    %c0_i32_0 = arith.constant 0 : i32
    %c0_i32_1 = arith.constant 0 : i32
    return %c0_i32, %c0_i32_0 : i32, i32
  }
  func.func @transform_5(%arg0: i32, %arg1: i32) -> (i32, i32) {
    %c0_i32 = arith.constant 0 : i32
    %c0_i32_0 = arith.constant 0 : i32
    %c0_i32_1 = arith.constant 0 : i32
    return %c0_i32, %c0_i32_0 : i32, i32
  }
  func.func @transform_6(%arg0: i32, %arg1: i32) -> (i32, i32) {
    %c0_i32 = arith.constant 0 : i32
    %c0_i32_0 = arith.constant 0 : i32
    %c0_i32_1 = arith.constant 0 : i32
    return %c0_i32, %c0_i32_0 : i32, i32
  }
  func.func @transform_7(%arg0: i32, %arg1: i32) -> (i32, i32) {
    %c0_i32 = arith.constant 0 : i32
    %c0_i32_0 = arith.constant 0 : i32
    %c0_i32_1 = arith.constant 0 : i32
    return %c0_i32, %c0_i32_0 : i32, i32
  }
  func.func @transform_8(%arg0: i32, %arg1: i32) -> (i32, i32) {
    %c0_i32 = arith.constant 0 : i32
    %c0_i32_0 = arith.constant 0 : i32
    %c0_i32_1 = arith.constant 0 : i32
    return %c0_i32, %c0_i32_0 : i32, i32
  }
  func.func @transform_9(%arg0: i32, %arg1: i32) -> (i32, i32) {
    %c0_i32 = arith.constant 0 : i32
    %c0_i32_0 = arith.constant 0 : i32
    %c0_i32_1 = arith.constant 0 : i32
    return %c0_i32, %c0_i32_0 : i32, i32
  }
  func.func @transform_10(%arg0: i32, %arg1: i32) -> (i32, i32) {
    %c0_i32 = arith.constant 0 : i32
    %c0_i32_0 = arith.constant 0 : i32
    %c0_i32_1 = arith.constant 0 : i32
    return %c0_i32, %c0_i32_0 : i32, i32
  }
  func.func @transform_11(%arg0: i32, %arg1: i32) -> (i32, i32) {
    %c0_i32 = arith.constant 0 : i32
    %c0_i32_0 = arith.constant 0 : i32
    %c0_i32_1 = arith.constant 0 : i32
    return %c0_i32, %c0_i32_0 : i32, i32
  }
  func.func @transform_12(%arg0: i32, %arg1: i32) -> (i32, i32) {
    %c0_i32 = arith.constant 0 : i32
    %c0_i32_0 = arith.constant 0 : i32
    %c0_i32_1 = arith.constant 0 : i32
    return %c0_i32, %c0_i32_0 : i32, i32
  }
  func.func @transform_13(%arg0: i32, %arg1: i32) -> (i32, i32) {
    %c0_i32 = arith.constant 0 : i32
    %c0_i32_0 = arith.constant 0 : i32
    %c0_i32_1 = arith.constant 0 : i32
    return %c0_i32, %c0_i32_0 : i32, i32
  }
  func.func @transform_14(%arg0: i32, %arg1: i32) -> (i32, i32) {
    %c0_i32 = arith.constant 0 : i32
    %c0_i32_0 = arith.constant 0 : i32
    %c0_i32_1 = arith.constant 0 : i32
    return %c0_i32, %c0_i32_0 : i32, i32
  }
  func.func @transform_15(%arg0: i32, %arg1: i32) -> (i32, i32, i32) {
    %c0_i32 = arith.constant 0 : i32
    %c0_i32_0 = arith.constant 0 : i32
    return %arg0, %arg1, %c0_i32 : i32, i32, i32
  }
  func.func @transform_16(%arg0: i32, %arg1: i32) -> (i32, i32, i32) {
    %c0_i32 = arith.constant 0 : i32
    %c0_i32_0 = arith.constant 0 : i32
    return %arg0, %arg1, %c0_i32 : i32, i32, i32
  }
}

</mosaic_0001>

<llo_original>
// kernel: encoder_layer_forward.1
$region0: #{encoder_layer_forward.1}
  #allocation0 [shape = 'u32[]', space=smem, size = 0x4, offset = 0x4, fixed_abs, tag = 'smem constant byte address 0x4 - core index']
  #allocation1 [shape = 'u32[144,128]{1,0:T(1,128)}', space=vmem, size = 0x12000, scoped, tag = 'internal scratch']
  #allocation2 [shape = 'bf16[8,32]{1,0:T(8,128)(2,1)}', space=vmem, size = 0x800, scoped, tag = 'scratch operand']
  #allocation3 [shape = 'bf16[8,32]{1,0:T(8,128)(2,1)}', space=vmem, size = 0x800, scoped, tag = 'scratch operand']
  %s0 = inlined_call_operand.vmem [shape: f32[2,8,32], index: 0, kind: input, shape index: {}, may-alias: {0,1}]
  %s1 = inlined_call_operand.vmem [shape: f32[2,8,32], index: 1, kind: input, shape index: {}, may-alias: {0,1}]
  %s2 = inlined_call_operand.vmem [shape: f32[2,1,8], index: 2, kind: input, shape index: {}]
  %s3 = inlined_call_operand.vmem [shape: bf16[32,32], index: 3, kind: input, shape index: {}]
  %s4 = inlined_call_operand.vmem [shape: f32[1,32], index: 4, kind: input, shape index: {}]
  %s5 = inlined_call_operand.vmem [shape: bf16[32,32], index: 5, kind: input, shape index: {}]
  %s6 = inlined_call_operand.vmem [shape: f32[1,32], index: 6, kind: input, shape index: {}]
  %s7 = inlined_call_operand.vmem [shape: bf16[32,32], index: 7, kind: input, shape index: {}]
  %s8 = inlined_call_operand.hbm [shape: f32[1,32], index: 8, kind: input, shape index: {}]
  %s9 = inlined_call_operand.hbm [shape: bf16[32,32], index: 9, kind: input, shape index: {}]
  %s10 = inlined_call_operand.hbm [shape: f32[1,32], index: 10, kind: input, shape index: {}]
  %s11 = inlined_call_operand.hbm [shape: bf16[32,64], index: 11, kind: input, shape index: {}]
  %s12 = inlined_call_operand.hbm [shape: f32[1,64], index: 12, kind: input, shape index: {}]
  %s13 = inlined_call_operand.vmem [shape: bf16[64,32], index: 13, kind: input, shape index: {}]
  %s14 = inlined_call_operand.hbm [shape: f32[1,32], index: 14, kind: input, shape index: {}]
  %s15 = inlined_call_operand.hbm [shape: f32[2,8,32], index: 15, kind: output, shape index: {0}]
  %s16 = inlined_call_operand.hbm [shape: f32[2,8,32], index: 16, kind: output, shape index: {1}]
  %17 = xla_tuple %s15, %s16
  %s18 = sld [smem:[#allocation0]]
  $region129: #{encoder_layer_forward.1} parent=0
    _
  %s20 = ssub.s32 1, %s18
  %s21 = scalar_select 0, %s20, %s18
  $region1: #{encoder_layer_forward.1} parent=0
    #allocation4 [shape = 'u8[512]{0}', space=vmem, size = 0x400, scoped, tag = 'input window, operand 8, single buffered']
    #allocation5 [shape = 's32[2]{0}', space=sflag, size = 0x8, scoped, tag = 'scoped memory for encoder_layer_forward.1']
    #allocation6 [shape = 's32[2]{0}', space=sflag, size = 0x8, scoped, tag = 'scoped memory for encoder_layer_forward.1']
    #allocation7 [shape = 'u8[8192]{0}', space=vmem, size = 0x2000, scoped, tag = 'input window, operand 9, single buffered']
    #allocation8 [shape = 's32[1]{0}', space=sflag, size = 0x4, scoped, tag = 'scoped memory for encoder_layer_forward.1']
    #allocation9 [shape = 'u8[512]{0}', space=vmem, size = 0x400, scoped, tag = 'input window, operand 10, single buffered']
    #allocation10 [shape = 'u8[8192]{0}', space=vmem, size = 0x2000, scoped, tag = 'input window, operand 11, single buffered']
    #allocation11 [shape = 's32[1]{0}', space=sflag, size = 0x4, scoped, tag = 'scoped memory for encoder_layer_forward.1']
    #allocation12 [shape = 'u8[512]{0}', space=vmem, size = 0x400, scoped, tag = 'input window, operand 12, single buffered']
    #allocation13 [shape = 'u8[512]{0}', space=vmem, size = 0x400, scoped, tag = 'input window, operand 14, single buffered']
    #allocation14 [shape = 's32[1]{0}', space=sflag, size = 0x4, scoped, tag = 'scoped memory for encoder_layer_forward.1']
    #allocation15 [shape = 'u8[8192]{0}', space=vmem, size = 0x2000, scoped, tag = 'output window, operand 0']
    #allocation16 [shape = 'u8[8192]{0}', space=vmem, size = 0x2000, scoped, tag = 'output window, operand 1']
    #allocation17 [shape = 's32[2]{0}', space=sflag, size = 0x8, scoped, tag = 'scoped memory for encoder_layer_forward.1']
    %22 = vsyncpa [#allocation5], 0
    %23 = vsyncpa [#allocation8], 0
    %24 = vsyncpa [#allocation11], 0
    %25 = vsyncpa [#allocation14], 0
    %26 = vsyncpa [#allocation6], 0
    %s27 = scalar_lea.sflag [#allocation6], 1
    %28 = vsyncpa %s27, 0
    %29 = vsyncpa [#allocation17], 0
    %s30 = scalar_lea.sflag [#allocation17], 1
    %31 = vsyncpa %s30, 0
    loop: start=0, step=1, limit=4
    $region2: #{encoder_layer_forward.1} parent=1 // loop_pre_header
      _
    $region3: #{encoder_layer_forward.1} parent=1 // loop_header
      %s33 = sphi 0, %s37
      %p34 = scmp.ge.s32.totalorder %s33, 4
      %s40 = sphi 0, %s52
      %s41 = sphi 0, %s48
      %s42 = sphi 0, %s40
      %s43 = sphi 0, %s41
      %s44 = sphi 0, %s42
      %s45 = sphi 0, %s43
      %s57 = sphi 0, %s59
      %s60 = sphi 0, %s57
      %s61 = sphi 0, %s60
      %s77 = sphi 0, %s61
      %s83 = sphi 0, %s85
      %s86 = sphi 0, %s83
      %s87 = sphi 0, %s86
      %s103 = sphi 0, %s87
      %s109 = sphi 0, %s111
      %s112 = sphi 0, %s109
      %s113 = sphi 0, %s112
      %s129 = sphi 0, %s113
      %s133 = sphi 0, %s133
      %s135 = sphi 0, %s133
      %s136 = sphi 0, %s135
      %s150 = sphi 0, %s136
      %s154 = sphi 0, %s154
      %s156 = sphi 0, %s154
      %s157 = sphi 0, %s156
      %s171 = sphi 0, %s157
      %s175 = sphi 0, %s175
      %s177 = sphi 0, %s175
      %s178 = sphi 0, %s177
      %s192 = sphi 0, %s178
      %s196 = sphi 0, %s196
      %s198 = sphi 0, %s196
      %s199 = sphi 0, %s198
      %s213 = sphi 0, %s199
      %s217 = sphi 0, %s217
      %s219 = sphi 0, %s217
      %s220 = sphi 0, %s219
      %s234 = sphi 0, %s220
      %s238 = sphi 0, %s238
      %s240 = sphi 0, %s238
      %s241 = sphi 0, %s240
      %s255 = sphi 0, %s241
      %s259 = sphi 0, %s259
      %s261 = sphi 0, %s259
      %s262 = sphi 0, %s261
      %s276 = sphi 0, %s262
      %s280 = sphi 0, %s280
      %s282 = sphi 0, %s280
      %s283 = sphi 0, %s282
      %s297 = sphi 0, %s283
      %s301 = sphi 0, %s301
      %s303 = sphi 0, %s301
      %s304 = sphi 0, %s303
      %s318 = sphi 0, %s304
      %s322 = sphi 0, %s322
      %s324 = sphi 0, %s322
      %s325 = sphi 0, %s324
      %s339 = sphi 0, %s325
      %s343 = sphi 0, %s343
      %s345 = sphi 0, %s343
      %s346 = sphi 0, %s345
      %s360 = sphi 0, %s346
      %s364 = sphi 0, %s364
      %s366 = sphi 0, %s364
      %s367 = sphi 0, %s366
      %s381 = sphi 0, %s367
      %s389 = sphi 0, %s391
      %s392 = sphi 0, %s389
      %s393 = sphi 0, %s392
      %s409 = sphi 0, %s393
      %s417 = sphi 0, %s419
      %s420 = sphi 0, %s417
      %s421 = sphi 0, %s420
      %s437 = sphi 0, %s421
    $region4: #{encoder_layer_forward.1} parent=1 // loop_header_branch
      %36 = sbr.rel (%p34) target = $region8
    $region5: #{encoder_layer_forward.1} parent=1 // loop_body
      %s38 = ssub.s32 %s33, 1
      %s39 = ssub.s32 %s33, 2
      %s46 = sadd.s32 1, %s41
      %p47 = scmp.ge.s32.totalorder %s46, 1
      %s48 = scalar_select %p47, 0, %s46
      %s49 = sadd.s32 1, %s40
      %s50 = scalar_select %p47, %s49, %s40
      %p51 = scmp.ge.s32.totalorder %s50, 2
      %s52 = scalar_select %p51, 0, %s50
      %s53 = ssub.s32 %s40, %s52
      %s54 = ssub.s32 %s41, %s48
      %s55 = sor.u32 %s53, %s54
      %p56 = scmp.eq.s32.totalorder %s55, 0
      %s58 = sadd.s32 %s57, 1
      %s59 = scalar_select %p56, %s57, %s58
      %p62 = pneg %p56
      %p63 = scmp.eq.s32.totalorder %s33, 1
      %p64 = por %p62, %p63
      %p65 = scmp.ne.s32.totalorder %s57, %s60
      %p66 = scmp.eq.s32.totalorder %s33, 0
      %p67 = por %p65, %p66
      %p68 = scmp.ne.s32.totalorder %s57, %s60
      %p69 = scmp.eq.s32.totalorder %s38, 1
      %p70 = por %p68, %p69
      %p71 = scmp.ne.s32.totalorder %s60, %s61
      %p72 = scmp.eq.s32.totalorder %s38, 0
      %p73 = por %p71, %p72
      %p74 = scmp.ne.s32.totalorder %s60, %s61
      %p75 = scmp.eq.s32.totalorder %s39, 1
      %p76 = por %p74, %p75
      %p78 = scmp.ne.s32.totalorder %s61, %s77
      %p79 = scmp.eq.s32.totalorder %s39, 0
      %p80 = por %p78, %p79
      %s81 = ssub.s32 %s40, %s52
      %p82 = scmp.eq.s32.totalorder %s81, 0
      %s84 = sadd.s32 %s83, 1
      %s85 = scalar_select %p82, %s83, %s84
      %p88 = pneg %p82
      %p89 = scmp.eq.s32.totalorder %s33, 1
      %p90 = por %p88, %p89
      %p91 = scmp.ne.s32.totalorder %s83, %s86
      %p92 = scmp.eq.s32.totalorder %s33, 0
      %p93 = por %p91, %p92
      %p94 = scmp.ne.s32.totalorder %s83, %s86
      %p95 = scmp.eq.s32.totalorder %s38, 1
      %p96 = por %p94, %p95
      %p97 = scmp.ne.s32.totalorder %s86, %s87
      %p98 = scmp.eq.s32.totalorder %s38, 0
      %p99 = por %p97, %p98
      %p100 = scmp.ne.s32.totalorder %s86, %s87
      %p101 = scmp.eq.s32.totalorder %s39, 1
      %p102 = por %p100, %p101
      %p104 = scmp.ne.s32.totalorder %s87, %s103
      %p105 = scmp.eq.s32.totalorder %s39, 0
      %p106 = por %p104, %p105
      %s107 = ssub.s32 %s40, %s52
      %p108 = scmp.eq.s32.totalorder %s107, 0
      %s110 = sadd.s32 %s109, 1
      %s111 = scalar_select %p108, %s109, %s110
      %p114 = pneg %p108
      %p115 = scmp.eq.s32.totalorder %s33, 1
      %p116 = por %p114, %p115
      %p117 = scmp.ne.s32.totalorder %s109, %s112
      %p118 = scmp.eq.s32.totalorder %s33, 0
      %p119 = por %p117, %p118
      %p120 = scmp.ne.s32.totalorder %s109, %s112
      %p121 = scmp.eq.s32.totalorder %s38, 1
      %p122 = por %p120, %p121
      %p123 = scmp.ne.s32.totalorder %s112, %s113
      %p124 = scmp.eq.s32.totalorder %s38, 0
      %p125 = por %p123, %p124
      %p126 = scmp.ne.s32.totalorder %s112, %s113
      %p127 = scmp.eq.s32.totalorder %s39, 1
      %p128 = por %p126, %p127
      %p130 = scmp.ne.s32.totalorder %s113, %s129
      %p131 = scmp.eq.s32.totalorder %s39, 0
      %p132 = por %p130, %p131
      %s134 = sadd.s32 %s133, 1
      %p137 = scmp.eq.s32.totalorder %s33, 1
      %p138 = scmp.ne.s32.totalorder %s133, %s135
      %p139 = scmp.eq.s32.totalorder %s33, 0
      %p140 = por %p138, %p139
      %p141 = scmp.ne.s32.totalorder %s133, %s135
      %p142 = scmp.eq.s32.totalorder %s38, 1
      %p143 = por %p141, %p142
      %p144 = scmp.ne.s32.totalorder %s135, %s136
      %p145 = scmp.eq.s32.totalorder %s38, 0
      %p146 = por %p144, %p145
      %p147 = scmp.ne.s32.totalorder %s135, %s136
      %p148 = scmp.eq.s32.totalorder %s39, 1
      %p149 = por %p147, %p148
      %p151 = scmp.ne.s32.totalorder %s136, %s150
      %p152 = scmp.eq.s32.totalorder %s39, 0
      %p153 = por %p151, %p152
      %s155 = sadd.s32 %s154, 1
      %p158 = scmp.eq.s32.totalorder %s33, 1
      %p159 = scmp.ne.s32.totalorder %s154, %s156
      %p160 = scmp.eq.s32.totalorder %s33, 0
      %p161 = por %p159, %p160
      %p162 = scmp.ne.s32.totalorder %s154, %s156
      %p163 = scmp.eq.s32.totalorder %s38, 1
      %p164 = por %p162, %p163
      %p165 = scmp.ne.s32.totalorder %s156, %s157
      %p166 = scmp.eq.s32.totalorder %s38, 0
      %p167 = por %p165, %p166
      %p168 = scmp.ne.s32.totalorder %s156, %s157
      %p169 = scmp.eq.s32.totalorder %s39, 1
      %p170 = por %p168, %p169
      %p172 = scmp.ne.s32.totalorder %s157, %s171
      %p173 = scmp.eq.s32.totalorder %s39, 0
      %p174 = por %p172, %p173
      %s176 = sadd.s32 %s175, 1
      %p179 = scmp.eq.s32.totalorder %s33, 1
      %p180 = scmp.ne.s32.totalorder %s175, %s177
      %p181 = scmp.eq.s32.totalorder %s33, 0
      %p182 = por %p180, %p181
      %p183 = scmp.ne.s32.totalorder %s175, %s177
      %p184 = scmp.eq.s32.totalorder %s38, 1
      %p185 = por %p183, %p184
      %p186 = scmp.ne.s32.totalorder %s177, %s178
      %p187 = scmp.eq.s32.totalorder %s38, 0
      %p188 = por %p186, %p187
      %p189 = scmp.ne.s32.totalorder %s177, %s178
      %p190 = scmp.eq.s32.totalorder %s39, 1
      %p191 = por %p189, %p190
      %p193 = scmp.ne.s32.totalorder %s178, %s192
      %p194 = scmp.eq.s32.totalorder %s39, 0
      %p195 = por %p193, %p194
      %s197 = sadd.s32 %s196, 1
      %p200 = scmp.eq.s32.totalorder %s33, 1
      %p201 = scmp.ne.s32.totalorder %s196, %s198
      %p202 = scmp.eq.s32.totalorder %s33, 0
      %p203 = por %p201, %p202
      %p204 = scmp.ne.s32.totalorder %s196, %s198
      %p205 = scmp.eq.s32.totalorder %s38, 1
      %p206 = por %p204, %p205
      %p207 = scmp.ne.s32.totalorder %s198, %s199
      %p208 = scmp.eq.s32.totalorder %s38, 0
      %p209 = por %p207, %p208
      %p210 = scmp.ne.s32.totalorder %s198, %s199
      %p211 = scmp.eq.s32.totalorder %s39, 1
      %p212 = por %p210, %p211
      %p214 = scmp.ne.s32.totalorder %s199, %s213
      %p215 = scmp.eq.s32.totalorder %s39, 0
      %p216 = por %p214, %p215
      %s218 = sadd.s32 %s217, 1
      %p221 = scmp.eq.s32.totalorder %s33, 1
      %p222 = scmp.ne.s32.totalorder %s217, %s219
      %p223 = scmp.eq.s32.totalorder %s33, 0
      %p224 = por %p222, %p223
      %p225 = scmp.ne.s32.totalorder %s217, %s219
      %p226 = scmp.eq.s32.totalorder %s38, 1
      %p227 = por %p225, %p226
      %p228 = scmp.ne.s32.totalorder %s219, %s220
      %p229 = scmp.eq.s32.totalorder %s38, 0
      %p230 = por %p228, %p229
      %p231 = scmp.ne.s32.totalorder %s219, %s220
      %p232 = scmp.eq.s32.totalorder %s39, 1
      %p233 = por %p231, %p232
      %p235 = scmp.ne.s32.totalorder %s220, %s234
      %p236 = scmp.eq.s32.totalorder %s39, 0
      %p237 = por %p235, %p236
      %s239 = sadd.s32 %s238, 1
      %p242 = scmp.eq.s32.totalorder %s33, 1
      %p243 = scmp.ne.s32.totalorder %s238, %s240
      %p244 = scmp.eq.s32.totalorder %s33, 0
      %p245 = por %p243, %p244
      %p246 = scmp.ne.s32.totalorder %s238, %s240
      %p247 = scmp.eq.s32.totalorder %s38, 1
      %p248 = por %p246, %p247
      %p249 = scmp.ne.s32.totalorder %s240, %s241
      %p250 = scmp.eq.s32.totalorder %s38, 0
      %p251 = por %p249, %p250
      %p252 = scmp.ne.s32.totalorder %s240, %s241
      %p253 = scmp.eq.s32.totalorder %s39, 1
      %p254 = por %p252, %p253
      %p256 = scmp.ne.s32.totalorder %s241, %s255
      %p257 = scmp.eq.s32.totalorder %s39, 0
      %p258 = por %p256, %p257
      %s260 = sadd.s32 %s259, 1
      %p263 = scmp.eq.s32.totalorder %s33, 1
      %p264 = scmp.ne.s32.totalorder %s259, %s261
      %p265 = scmp.eq.s32.totalorder %s33, 0
      %p266 = por %p264, %p265
      %p267 = scmp.ne.s32.totalorder %s259, %s261
      %p268 = scmp.eq.s32.totalorder %s38, 1
      %p269 = por %p267, %p268
      %p270 = scmp.ne.s32.totalorder %s261, %s262
      %p271 = scmp.eq.s32.totalorder %s38, 0
      %p272 = por %p270, %p271
      %p273 = scmp.ne.s32.totalorder %s261, %s262
      %p274 = scmp.eq.s32.totalorder %s39, 1
      %p275 = por %p273, %p274
      %p277 = scmp.ne.s32.totalorder %s262, %s276
      %p278 = scmp.eq.s32.totalorder %s39, 0
      %p279 = por %p277, %p278
      %s281 = sadd.s32 %s280, 1
      %p284 = scmp.eq.s32.totalorder %s33, 1
      %p285 = scmp.ne.s32.totalorder %s280, %s282
      %p286 = scmp.eq.s32.totalorder %s33, 0
      %p287 = por %p285, %p286
      %p288 = scmp.ne.s32.totalorder %s280, %s282
      %p289 = scmp.eq.s32.totalorder %s38, 1
      %p290 = por %p288, %p289
      %p291 = scmp.ne.s32.totalorder %s282, %s283
      %p292 = scmp.eq.s32.totalorder %s38, 0
      %p293 = por %p291, %p292
      %p294 = scmp.ne.s32.totalorder %s282, %s283
      %p295 = scmp.eq.s32.totalorder %s39, 1
      %p296 = por %p294, %p295
      %p298 = scmp.ne.s32.totalorder %s283, %s297
      %p299 = scmp.eq.s32.totalorder %s39, 0
      %p300 = por %p298, %p299
      %s302 = sadd.s32 %s301, 1
      %p305 = scmp.eq.s32.totalorder %s33, 1
      %p306 = scmp.ne.s32.totalorder %s301, %s303
      %p307 = scmp.eq.s32.totalorder %s33, 0
      %p308 = por %p306, %p307
      %p309 = scmp.ne.s32.totalorder %s301, %s303
      %p310 = scmp.eq.s32.totalorder %s38, 1
      %p311 = por %p309, %p310
      %p312 = scmp.ne.s32.totalorder %s303, %s304
      %p313 = scmp.eq.s32.totalorder %s38, 0
      %p314 = por %p312, %p313
      %p315 = scmp.ne.s32.totalorder %s303, %s304
      %p316 = scmp.eq.s32.totalorder %s39, 1
      %p317 = por %p315, %p316
      %p319 = scmp.ne.s32.totalorder %s304, %s318
      %p320 = scmp.eq.s32.totalorder %s39, 0
      %p321 = por %p319, %p320
      %s323 = sadd.s32 %s322, 1
      %p326 = scmp.eq.s32.totalorder %s33, 1
      %p327 = scmp.ne.s32.totalorder %s322, %s324
      %p328 = scmp.eq.s32.totalorder %s33, 0
      %p329 = por %p327, %p328
      %p330 = scmp.ne.s32.totalorder %s322, %s324
      %p331 = scmp.eq.s32.totalorder %s38, 1
      %p332 = por %p330, %p331
      %p333 = scmp.ne.s32.totalorder %s324, %s325
      %p334 = scmp.eq.s32.totalorder %s38, 0
      %p335 = por %p333, %p334
      %p336 = scmp.ne.s32.totalorder %s324, %s325
      %p337 = scmp.eq.s32.totalorder %s39, 1
      %p338 = por %p336, %p337
      %p340 = scmp.ne.s32.totalorder %s325, %s339
      %p341 = scmp.eq.s32.totalorder %s39, 0
      %p342 = por %p340, %p341
      %s344 = sadd.s32 %s343, 1
      %p347 = scmp.eq.s32.totalorder %s33, 1
      %p348 = scmp.ne.s32.totalorder %s343, %s345
      %p349 = scmp.eq.s32.totalorder %s33, 0
      %p350 = por %p348, %p349
      %p351 = scmp.ne.s32.totalorder %s343, %s345
      %p352 = scmp.eq.s32.totalorder %s38, 1
      %p353 = por %p351, %p352
      %p354 = scmp.ne.s32.totalorder %s345, %s346
      %p355 = scmp.eq.s32.totalorder %s38, 0
      %p356 = por %p354, %p355
      %p357 = scmp.ne.s32.totalorder %s345, %s346
      %p358 = scmp.eq.s32.totalorder %s39, 1
      %p359 = por %p357, %p358
      %p361 = scmp.ne.s32.totalorder %s346, %s360
      %p362 = scmp.eq.s32.totalorder %s39, 0
      %p363 = por %p361, %p362
      %s365 = sadd.s32 %s364, 1
      %p368 = scmp.eq.s32.totalorder %s33, 1
      %p369 = scmp.ne.s32.totalorder %s364, %s366
      %p370 = scmp.eq.s32.totalorder %s33, 0
      %p371 = por %p369, %p370
      %p372 = scmp.ne.s32.totalorder %s364, %s366
      %p373 = scmp.eq.s32.totalorder %s38, 1
      %p374 = por %p372, %p373
      %p375 = scmp.ne.s32.totalorder %s366, %s367
      %p376 = scmp.eq.s32.totalorder %s38, 0
      %p377 = por %p375, %p376
      %p378 = scmp.ne.s32.totalorder %s366, %s367
      %p379 = scmp.eq.s32.totalorder %s39, 1
      %p380 = por %p378, %p379
      %p382 = scmp.ne.s32.totalorder %s367, %s381
      %p383 = scmp.eq.s32.totalorder %s39, 0
      %p384 = por %p382, %p383
      %s385 = ssub.s32 %s40, %s52
      %s386 = ssub.s32 %s41, %s48
      %s387 = sor.u32 %s385, %s386
      %p388 = scmp.eq.s32.totalorder %s387, 0
      %s390 = sadd.s32 %s389, 1
      %s391 = scalar_select %p388, %s389, %s390
      %p394 = pneg %p388
      %p395 = scmp.eq.s32.totalorder %s33, 1
      %p396 = por %p394, %p395
      %p397 = scmp.ne.s32.totalorder %s389, %s392
      %p398 = scmp.eq.s32.totalorder %s33, 0
      %p399 = por %p397, %p398
      %p400 = scmp.ne.s32.totalorder %s389, %s392
      %p401 = scmp.eq.s32.totalorder %s38, 1
      %p402 = por %p400, %p401
      %p403 = scmp.ne.s32.totalorder %s392, %s393
      %p404 = scmp.eq.s32.totalorder %s38, 0
      %p405 = por %p403, %p404
      %p406 = scmp.ne.s32.totalorder %s392, %s393
      %p407 = scmp.eq.s32.totalorder %s39, 1
      %p408 = por %p406, %p407
      %p410 = scmp.ne.s32.totalorder %s393, %s409
      %p411 = scmp.eq.s32.totalorder %s39, 0
      %p412 = por %p410, %p411
      %s413 = ssub.s32 %s40, %s52
      %s414 = ssub.s32 %s41, %s48
      %s415 = sor.u32 %s413, %s414
      %p416 = scmp.eq.s32.totalorder %s415, 0
      %s418 = sadd.s32 %s417, 1
      %s419 = scalar_select %p416, %s417, %s418
      %p422 = pneg %p416
      %p423 = scmp.eq.s32.totalorder %s33, 1
      %p424 = por %p422, %p423
      %p425 = scmp.ne.s32.totalorder %s417, %s420
      %p426 = scmp.eq.s32.totalorder %s33, 0
      %p427 = por %p425, %p426
      %p428 = scmp.ne.s32.totalorder %s417, %s420
      %p429 = scmp.eq.s32.totalorder %s38, 1
      %p430 = por %p428, %p429
      %p431 = scmp.ne.s32.totalorder %s420, %s421
      %p432 = scmp.eq.s32.totalorder %s38, 0
      %p433 = por %p431, %p432
      %p434 = scmp.ne.s32.totalorder %s420, %s421
      %p435 = scmp.eq.s32.totalorder %s39, 1
      %p436 = por %p434, %p435
      %p438 = scmp.ne.s32.totalorder %s421, %s437
      %p439 = scmp.eq.s32.totalorder %s39, 0
      %p440 = por %p438, %p439
      %p441 = scmp.le.s32.totalorder 1, %s33
      %p442 = scmp.lt.s32.totalorder %s33, 3
      %p443 = pnand %p441, %p442
      %p444 = pneg %p443
      // Predicated region
      $region9: #{encoder_layer_forward.1} parent=5 // pred_check
        _
      $region10: #{encoder_layer_forward.1} parent=5 // pred_check_branch
        %446 = sbr.rel (%p443) target = $region12
      $region11: #{encoder_layer_forward.1} parent=5 // pred_region
        %s447 = ssub.s32 %s33, 1
        // Predicated region
        $region13: #{encoder_layer_forward.1} parent=11 // pred_check
          %p448 = pneg %p146
        $region14: #{encoder_layer_forward.1} parent=11 // pred_check_branch
          %450 = sbr.rel (%p448) target = $region16
        $region15: #{encoder_layer_forward.1} parent=11 // pred_region
          _
        $region16: #{encoder_layer_forward.1} parent=11 // pred_fallthru
          _
        // Predicated region
        $region17: #{encoder_layer_forward.1} parent=11 // pred_check
          %p451 = pneg %p167
        $region18: #{encoder_layer_forward.1} parent=11 // pred_check_branch
          %453 = sbr.rel (%p451) target = $region20
        $region19: #{encoder_layer_forward.1} parent=11 // pred_region
          _
        $region20: #{encoder_layer_forward.1} parent=11 // pred_fallthru
          _
        // Predicated region
        $region21: #{encoder_layer_forward.1} parent=11 // pred_check
          %p454 = pneg %p188
        $region22: #{encoder_layer_forward.1} parent=11 // pred_check_branch
          %456 = sbr.rel (%p454) target = $region24
        $region23: #{encoder_layer_forward.1} parent=11 // pred_region
          _
        $region24: #{encoder_layer_forward.1} parent=11 // pred_fallthru
          _
        // Predicated region
        $region25: #{encoder_layer_forward.1} parent=11 // pred_check
          %p457 = pneg %p209
        $region26: #{encoder_layer_forward.1} parent=11 // pred_check_branch
          %459 = sbr.rel (%p457) target = $region28
        $region27: #{encoder_layer_forward.1} parent=11 // pred_region
          _
        $region28: #{encoder_layer_forward.1} parent=11 // pred_fallthru
          _
        // Predicated region
        $region29: #{encoder_layer_forward.1} parent=11 // pred_check
          %p460 = pneg %p230
        $region30: #{encoder_layer_forward.1} parent=11 // pred_check_branch
          %462 = sbr.rel (%p460) target = $region32
        $region31: #{encoder_layer_forward.1} parent=11 // pred_region
          _
        $region32: #{encoder_layer_forward.1} parent=11 // pred_fallthru
          _
        // Predicated region
        $region33: #{encoder_layer_forward.1} parent=11 // pred_check
          %p463 = pneg %p251
        $region34: #{encoder_layer_forward.1} parent=11 // pred_check_branch
          %465 = sbr.rel (%p463) target = $region36
        $region35: #{encoder_layer_forward.1} parent=11 // pred_region
          %s467 = ssub.s32 16, 16
          %468 = vsyncadd [#allocation5], %s467
          %s470 = sshll.u32 [#allocation4], 4
          %s471 = int_to_ptr.vmem [resolvable:$true] %s470
          %473 = dma.hbm_to_vmem [thread:$0]  %s8, 16, %s471, [#allocation5]
        $region36: #{encoder_layer_forward.1} parent=11 // pred_fallthru
          _
        // Predicated region
        $region37: #{encoder_layer_forward.1} parent=11 // pred_check
          %p474 = pneg %p272
        $region38: #{encoder_layer_forward.1} parent=11 // pred_check_branch
          %476 = sbr.rel (%p474) target = $region40
        $region39: #{encoder_layer_forward.1} parent=11 // pred_region
          %s478 = ssub.s32 256, 256
          %479 = vsyncadd [#allocation8], %s478
          %s480 = sshll.u32 [#allocation7], 4
          %s481 = int_to_ptr.vmem [resolvable:$true] %s480
          %486 = dma.hbm_to_vmem [thread:$0]  %s9, 256, %s481, [#allocation8], 64, 64, 4
        $region40: #{encoder_layer_forward.1} parent=11 // pred_fallthru
          _
        // Predicated region
        $region41: #{encoder_layer_forward.1} parent=11 // pred_check
          %p487 = pneg %p293
        $region42: #{encoder_layer_forward.1} parent=11 // pred_check_branch
          %489 = sbr.rel (%p487) target = $region44
        $region43: #{encoder_layer_forward.1} parent=11 // pred_region
          %s491 = ssub.s32 16, 16
          %492 = vsyncadd [#allocation8], %s491
          %s494 = sshll.u32 [#allocation9], 4
          %s495 = int_to_ptr.vmem [resolvable:$true] %s494
          %497 = dma.hbm_to_vmem [thread:$0]  %s10, 16, %s495, [#allocation8]
        $region44: #{encoder_layer_forward.1} parent=11 // pred_fallthru
          _
        // Predicated region
        $region45: #{encoder_layer_forward.1} parent=11 // pred_check
          %p498 = pneg %p314
        $region46: #{encoder_layer_forward.1} parent=11 // pred_check_branch
          %500 = sbr.rel (%p498) target = $region48
        $region47: #{encoder_layer_forward.1} parent=11 // pred_region
          %s502 = ssub.s32 256, 256
          %503 = vsyncadd [#allocation11], %s502
          %s504 = sshll.u32 [#allocation10], 4
          %s505 = int_to_ptr.vmem [resolvable:$true] %s504
          %510 = dma.hbm_to_vmem [thread:$0]  %s11, 256, %s505, [#allocation11], 64, 64, 4
        $region48: #{encoder_layer_forward.1} parent=11 // pred_fallthru
          _
        // Predicated region
        $region49: #{encoder_layer_forward.1} parent=11 // pred_check
          %p511 = pneg %p335
        $region50: #{encoder_layer_forward.1} parent=11 // pred_check_branch
          %513 = sbr.rel (%p511) target = $region52
        $region51: #{encoder_layer_forward.1} parent=11 // pred_region
          %s515 = ssub.s32 16, 16
          %516 = vsyncadd [#allocation11], %s515
          %s518 = sshll.u32 [#allocation12], 4
          %s519 = int_to_ptr.vmem [resolvable:$true] %s518
          %521 = dma.hbm_to_vmem [thread:$0]  %s12, 16, %s519, [#allocation11]
        $region52: #{encoder_layer_forward.1} parent=11 // pred_fallthru
          _
        // Predicated region
        $region53: #{encoder_layer_forward.1} parent=11 // pred_check
          %p522 = pneg %p356
        $region54: #{encoder_layer_forward.1} parent=11 // pred_check_branch
          %524 = sbr.rel (%p522) target = $region56
        $region55: #{encoder_layer_forward.1} parent=11 // pred_region
          _
        $region56: #{encoder_layer_forward.1} parent=11 // pred_fallthru
          _
        // Predicated region
        $region57: #{encoder_layer_forward.1} parent=11 // pred_check
          %p525 = pneg %p377
        $region58: #{encoder_layer_forward.1} parent=11 // pred_check_branch
          %527 = sbr.rel (%p525) target = $region60
        $region59: #{encoder_layer_forward.1} parent=11 // pred_region
          %s529 = ssub.s32 16, 16
          %530 = vsyncadd [#allocation14], %s529
          %s532 = sshll.u32 [#allocation13], 4
          %s533 = int_to_ptr.vmem [resolvable:$true] %s532
          %535 = dma.hbm_to_vmem [thread:$0]  %s14, 16, %s533, [#allocation14]
        $region60: #{encoder_layer_forward.1} parent=11 // pred_fallthru
          _
      $region12: #{encoder_layer_forward.1} parent=5 // pred_fallthru
        _
      %p536 = scmp.lt.s32.totalorder %s33, 2
      // Predicated region
      $region61: #{encoder_layer_forward.1} parent=5 // pred_check
        %p537 = pneg %p536
      $region62: #{encoder_layer_forward.1} parent=5 // pred_check_branch
        %539 = sbr.rel (%p537) target = $region64
      $region63: #{encoder_layer_forward.1} parent=5 // pred_region
        // Predicated region
        $region65: #{encoder_layer_forward.1} parent=63 // pred_check
          %p540 = pneg %p67
        $region66: #{encoder_layer_forward.1} parent=63 // pred_check_branch
          %542 = sbr.rel (%p540) target = $region68
        $region67: #{encoder_layer_forward.1} parent=63 // pred_region
          %p543 = scmp.lt.s32.totalorder %s40, 1
          %s544 = scalar_select %p543, %s40, 1
          %p545 = scmp.lt.s32.totalorder %s41, 0
          %s546 = scalar_select %p545, %s41, 0
          %s547 = sadd.s32 %s546, %s544
          %s548 = smul.addr %s547, 8
          %s549 = scalar_lea.vmem %s0, %s548
        $region68: #{encoder_layer_forward.1} parent=63 // pred_fallthru
          _
        // Predicated region
        $region69: #{encoder_layer_forward.1} parent=63 // pred_check
          %p550 = pneg %p93
        $region70: #{encoder_layer_forward.1} parent=63 // pred_check_branch
          %552 = sbr.rel (%p550) target = $region72
        $region71: #{encoder_layer_forward.1} parent=63 // pred_region
          %p553 = scmp.lt.s32.totalorder %s40, 1
          %s554 = scalar_select %p553, %s40, 1
          %s555 = smul.addr %s554, 8
          %s556 = scalar_lea.vmem %s1, %s555
        $region72: #{encoder_layer_forward.1} parent=63 // pred_fallthru
          _
        // Predicated region
        $region73: #{encoder_layer_forward.1} parent=63 // pred_check
          %p557 = pneg %p119
        $region74: #{encoder_layer_forward.1} parent=63 // pred_check_branch
          %559 = sbr.rel (%p557) target = $region76
        $region75: #{encoder_layer_forward.1} parent=63 // pred_region
          %p560 = scmp.lt.s32.totalorder %s40, 1
          %s561 = scalar_select %p560, %s40, 1
          %s562 = scalar_lea.vmem %s2, %s561
        $region76: #{encoder_layer_forward.1} parent=63 // pred_fallthru
          _
      $region64: #{encoder_layer_forward.1} parent=5 // pred_fallthru
        _
      %p563 = scmp.le.s32.totalorder 1, %s33
      %p564 = scmp.lt.s32.totalorder %s33, 3
      %p565 = pnand %p563, %p564
      %p566 = pneg %p565
      // Predicated region
      $region77: #{encoder_layer_forward.1} parent=5 // pred_check
        _
      $region78: #{encoder_layer_forward.1} parent=5 // pred_check_branch
        %568 = sbr.rel (%p565) target = $region80
      $region79: #{encoder_layer_forward.1} parent=5 // pred_region
        %s569 = ssub.s32 %s33, 1
        // Predicated region
        $region81: #{encoder_layer_forward.1} parent=79 // pred_check
          %p570 = pneg %p251
        $region82: #{encoder_layer_forward.1} parent=79 // pred_check_branch
          %572 = sbr.rel (%p570) target = $region84
        $region83: #{encoder_layer_forward.1} parent=79 // pred_region
          %573 = dma.done [#allocation5], 16
        $region84: #{encoder_layer_forward.1} parent=79 // pred_fallthru
          _
        // Predicated region
        $region85: #{encoder_layer_forward.1} parent=79 // pred_check
          %p574 = pneg %p272
        $region86: #{encoder_layer_forward.1} parent=79 // pred_check_branch
          %576 = sbr.rel (%p574) target = $region88
        $region87: #{encoder_layer_forward.1} parent=79 // pred_region
          %577 = dma.done [#allocation8], 256
        $region88: #{encoder_layer_forward.1} parent=79 // pred_fallthru
          _
        // Predicated region
        $region89: #{encoder_layer_forward.1} parent=79 // pred_check
          %p578 = pneg %p293
        $region90: #{encoder_layer_forward.1} parent=79 // pred_check_branch
          %580 = sbr.rel (%p578) target = $region92
        $region91: #{encoder_layer_forward.1} parent=79 // pred_region
          %581 = dma.done [#allocation8], 16
        $region92: #{encoder_layer_forward.1} parent=79 // pred_fallthru
          _
        // Predicated region
        $region93: #{encoder_layer_forward.1} parent=79 // pred_check
          %p582 = pneg %p314
        $region94: #{encoder_layer_forward.1} parent=79 // pred_check_branch
          %584 = sbr.rel (%p582) target = $region96
        $region95: #{encoder_layer_forward.1} parent=79 // pred_region
          %585 = dma.done [#allocation11], 256
        $region96: #{encoder_layer_forward.1} parent=79 // pred_fallthru
          _
        // Predicated region
        $region97: #{encoder_layer_forward.1} parent=79 // pred_check
          %p586 = pneg %p335
        $region98: #{encoder_layer_forward.1} parent=79 // pred_check_branch
          %588 = sbr.rel (%p586) target = $region100
        $region99: #{encoder_layer_forward.1} parent=79 // pred_region
          %589 = dma.done [#allocation11], 16
        $region100: #{encoder_layer_forward.1} parent=79 // pred_fallthru
          _
        // Predicated region
        $region101: #{encoder_layer_forward.1} parent=79 // pred_check
          %p590 = pneg %p377
        $region102: #{encoder_layer_forward.1} parent=79 // pred_check_branch
          %592 = sbr.rel (%p590) target = $region104
        $region103: #{encoder_layer_forward.1} parent=79 // pred_region
          %593 = dma.done [#allocation14], 16
        $region104: #{encoder_layer_forward.1} parent=79 // pred_fallthru
          _
        %p594 = scmp.lt.s32.totalorder %s42, 1
        %s595 = scalar_select %p594, %s42, 1
        %p596 = scmp.lt.s32.totalorder %s43, 0
        %s597 = scalar_select %p596, %s43, 0
        %s598 = sadd.s32 %s597, %s595
        %s599 = smul.addr %s598, 8
        %s600 = scalar_lea.vmem %s0, %s599
        %p601 = pneg %p73
        %p602 = pneg %p70
        %p603 = scmp.lt.s32.totalorder %s42, 1
        %s604 = scalar_select %p603, %s42, 1
        %s605 = smul.addr %s604, 8
        %s606 = scalar_lea.vmem %s1, %s605
        %p607 = pneg %p99
        %p608 = pneg %p96
        %p609 = scmp.lt.s32.totalorder %s42, 1
        %s610 = scalar_select %p609, %s42, 1
        %s611 = scalar_lea.vmem %s2, %s610
        %p612 = pneg %p125
        %p613 = pneg %p122
        %p614 = pneg %p146
        %p615 = pneg %p143
        %p616 = pneg %p167
        %p617 = pneg %p164
        %p618 = pneg %p188
        %p619 = pneg %p185
        %p620 = pneg %p209
        %p621 = pneg %p206
        %p622 = pneg %p230
        %p623 = pneg %p227
        %p624 = pneg %p251
        %p625 = pneg %p248
        %p626 = pneg %p272
        %p627 = pneg %p269
        %p628 = pneg %p293
        %p629 = pneg %p290
        %p630 = pneg %p314
        %p631 = pneg %p311
        %p632 = pneg %p335
        %p633 = pneg %p332
        %p634 = pneg %p356
        %p635 = pneg %p353
        %p636 = pneg %p377
        %p637 = pneg %p374
        %p638 = pneg %p405
        %p639 = pneg %p402
        %s640 = sand.u32 %s392, 1
        %s641 = scalar_lea.sflag [#allocation6], %s640
        %s642 = sand.u32 %s392, 1
        %s643 = smul.addr %s642, 8
        %s644 = scalar_lea.vmem [#allocation15], %s643
        %p645 = pneg %p433
        %p646 = pneg %p430
        %s647 = sand.u32 %s420, 1
        %s648 = scalar_lea.sflag [#allocation17], %s647
        %s649 = sand.u32 %s420, 1
        %s650 = smul.addr %s649, 8
        %s651 = scalar_lea.vmem [#allocation16], %s650
        %p652 = scmp.lt.s32.totalorder %s42, 1
        %s653 = scalar_select %p652, %s42, 1
        %p654 = scmp.lt.s32.totalorder %s43, 0
        %s655 = scalar_select %p654, %s43, 0
        %s656 = sadd.s32 %s655, %s653
        %s657 = smul.addr %s656, 8
        %s658 = scalar_lea.vmem %s0, %s657
        %p659 = scmp.lt.s32.totalorder %s42, 1
        %s660 = scalar_select %p659, %s42, 1
        %s661 = smul.addr %s660, 8
        %s662 = scalar_lea.vmem %s1, %s661
        %p663 = scmp.lt.s32.totalorder %s42, 1
        %s664 = scalar_select %p663, %s42, 1
        %s665 = scalar_lea.vmem %s2, %s664
        %p667 = scmp.eq.s32.totalorder %s43, 0
        // Predicated region
        $region105: #{encoder_layer_forward.1} parent=79 // pred_check
          %p668 = pneg %p667
        $region106: #{encoder_layer_forward.1} parent=79 // pred_check_branch
          %670 = sbr.rel (%p668) target = $region108
        $region107: #{encoder_layer_forward.1} parent=79 // pred_region
          %v671 = vld [vmem:[%s662] sm:$0xff]
          %v672 = vpack.c.bf16 %v671, %v671
          %v673 = vld [vmem:[%s5] sm:$0xf]
          %v674 = vld [vmem:[%s5 + $0x4] sm:$0xf]
          %v675 = vld [vmem:[%s5 + $0x8] sm:$0xf]
          %v676 = vld [vmem:[%s5 + $0xc] sm:$0xf]
          %v677 = vld [vmem:[%s6] sm:$0x1]
          %v679 = vlaneseq
          %v680 = vshrl.u32 %v679, 7
          %v681 = vsub.s32 0, %v680
          %v682 = vrot.slane %v677, %v681
          %v688 = vunpack.c.l.b16 %v673
          %v689 = vunpack.c.l.b16 %v674
          %v690 = vunpack.c.l.b16 %v675
          %v691 = vunpack.c.l.b16 %v676
          %v692 = vpack.c.b16 %v689, %v688
          %v693 = vpack.c.b16 %v691, %v690
          %vm696 = vcmask 261120
          %v698 = vsel %vm696, %v672, 0
          %700 = vmatprep.subr.bf16.mxu0 0
          %701 = vmatpush1.bf16.msra.mxu0 %v692
          %702 = vmatprep.subr.bf16.mxu0 0
          %703 = vmatpush1.bf16.msra.mxu0 %v693
          %704 = vmatprep.subr.bf16.mxu0 0
          %705 = vmatpush1.bf16.msra.mxu0 0
          %706 = vmatprep.subr.bf16.mxu0 0
          %707 = vmatpush1.bf16.msra.mxu0 0
          %708 = vmatprep.subr.bf16.mxu0 0
          %709 = vmatpush1.bf16.msra.mxu0 0
          %710 = vmatprep.subr.bf16.mxu0 0
          %711 = vmatpush1.bf16.msra.mxu0 0
          %712 = vmatprep.subr.bf16.mxu0 0
          %713 = vmatpush1.bf16.msra.mxu0 0
          %714 = vmatprep.subr.bf16.mxu0 0
          %715 = vmatpush1.bf16.msra.mxu0 0
          %716 = vmatprep.subr.bf16.mxu0 0
          %717 = vmatpush1.bf16.msra.mxu0 0
          %718 = vmatprep.subr.bf16.mxu0 0
          %719 = vmatpush1.bf16.msra.mxu0 0
          %720 = vmatprep.subr.bf16.mxu0 0
          %721 = vmatpush1.bf16.msra.mxu0 0
          %722 = vmatprep.subr.bf16.mxu0 0
          %723 = vmatpush1.bf16.msra.mxu0 0
          %724 = vmatprep.subr.bf16.mxu0 0
          %725 = vmatpush1.bf16.msra.mxu0 0
          %726 = vmatprep.subr.bf16.mxu0 0
          %727 = vmatpush1.bf16.msra.mxu0 0
          %728 = vmatprep.subr.bf16.mxu0 0
          %729 = vmatpush1.bf16.msra.mxu0 0
          %730 = vmatprep.subr.bf16.mxu0 0
          %731 = vmatpush1.bf16.msra.mxu0 0
          %732 = vmatprep.mubr.bf16.mxu0 0
          %733 = vmatmul.mubr.bf16.gmra.mrb[0].mxu0 %v698
          %v734 = vpop.f32.mrb[0].mxu0
          %v735 = vadd.f32 %v682, %v734
          %v736 = vpop.f32.mrb[0].mxu0
          %v737 = vpop.f32.mrb[0].mxu0
          %v738 = vpop.f32.mrb[0].mxu0
          %739 = vdwg.mxu0
          %v740 = vld [vmem:[%s7] sm:$0xf]
          %v741 = vld [vmem:[%s7 + $0x4] sm:$0xf]
          %v742 = vld [vmem:[%s7 + $0x8] sm:$0xf]
          %v743 = vld [vmem:[%s7 + $0xc] sm:$0xf]
          %v744 = vld [vmem:[#allocation4] sm:$0x1]
          %v746 = vlaneseq
          %v747 = vshrl.u32 %v746, 7
          %v748 = vsub.s32 0, %v747
          %v749 = vrot.slane %v744, %v748
          %v755 = vunpack.c.l.b16 %v740
          %v756 = vunpack.c.l.b16 %v741
          %v757 = vunpack.c.l.b16 %v742
          %v758 = vunpack.c.l.b16 %v743
          %v759 = vpack.c.b16 %v756, %v755
          %v760 = vpack.c.b16 %v758, %v757
          %763 = vmatprep.subr.bf16.mxu0 0
          %764 = vmatpush1.bf16.msra.mxu0 %v759
          %765 = vmatprep.subr.bf16.mxu0 0
          %766 = vmatpush1.bf16.msra.mxu0 %v760
          %767 = vmatprep.subr.bf16.mxu0 0
          %768 = vmatpush1.bf16.msra.mxu0 0
          %769 = vmatprep.subr.bf16.mxu0 0
          %770 = vmatpush1.bf16.msra.mxu0 0
          %771 = vmatprep.subr.bf16.mxu0 0
          %772 = vmatpush1.bf16.msra.mxu0 0
          %773 = vmatprep.subr.bf16.mxu0 0
          %774 = vmatpush1.bf16.msra.mxu0 0
          %775 = vmatprep.subr.bf16.mxu0 0
          %776 = vmatpush1.bf16.msra.mxu0 0
          %777 = vmatprep.subr.bf16.mxu0 0
          %778 = vmatpush1.bf16.msra.mxu0 0
          %779 = vmatprep.subr.bf16.mxu0 0
          %780 = vmatpush1.bf16.msra.mxu0 0
          %781 = vmatprep.subr.bf16.mxu0 0
          %782 = vmatpush1.bf16.msra.mxu0 0
          %783 = vmatprep.subr.bf16.mxu0 0
          %784 = vmatpush1.bf16.msra.mxu0 0
          %785 = vmatprep.subr.bf16.mxu0 0
          %786 = vmatpush1.bf16.msra.mxu0 0
          %787 = vmatprep.subr.bf16.mxu0 0
          %788 = vmatpush1.bf16.msra.mxu0 0
          %789 = vmatprep.subr.bf16.mxu0 0
          %790 = vmatpush1.bf16.msra.mxu0 0
          %791 = vmatprep.subr.bf16.mxu0 0
          %792 = vmatpush1.bf16.msra.mxu0 0
          %793 = vmatprep.subr.bf16.mxu0 0
          %794 = vmatpush1.bf16.msra.mxu0 0
          %795 = vmatprep.mubr.bf16.mxu0 0
          %796 = vmatmul.mubr.bf16.gmra.mrb[0].mxu0 %v698
          %v797 = vpop.f32.mrb[0].mxu0
          %v798 = vadd.f32 %v749, %v797
          %v799 = vpop.f32.mrb[0].mxu0
          %v800 = vpop.f32.mrb[0].mxu0
          %v801 = vpop.f32.mrb[0].mxu0
          %802 = vdwg.mxu0
          %v803 = vpack.c.bf16 %v735, %v735
          %vm804 = vcmask 257024
          %805 = vst.msk [vmem:[#allocation2] sm:$0xf] %vm804, %v803
          %v806 = vpack.c.bf16 %v798, %v798
          %807 = vst.msk [vmem:[#allocation3] sm:$0xf] %vm804, %v806
        $region108: #{encoder_layer_forward.1} parent=79 // pred_fallthru
          _
        %v808 = vld [vmem:[%s658] sm:$0xff]
        %v809 = vpack.c.bf16 %v808, %v808
        %v810 = vld [vmem:[%s3] sm:$0xf]
        %v811 = vld [vmem:[%s3 + $0x4] sm:$0xf]
        %v812 = vld [vmem:[%s3 + $0x8] sm:$0xf]
        %v813 = vld [vmem:[%s3 + $0xc] sm:$0xf]
        %v814 = vld [vmem:[%s4] sm:$0x1]
        %v816 = vlaneseq
        %v817 = vshrl.u32 %v816, 7
        %v818 = vsub.s32 0, %v817
        %v819 = vrot.slane %v814, %v818
        %v825 = vunpack.c.l.b16 %v810
        %v826 = vunpack.c.l.b16 %v811
        %v827 = vunpack.c.l.b16 %v812
        %v828 = vunpack.c.l.b16 %v813
        %v829 = vpack.c.b16 %v826, %v825
        %v830 = vpack.c.b16 %v828, %v827
        %vm833 = vcmask 261120
        %v835 = vsel %vm833, %v809, 0
        %837 = vmatprep.subr.bf16.mxu0 0
        %838 = vmatpush1.bf16.msra.mxu0 %v829
        %839 = vmatprep.subr.bf16.mxu0 0
        %840 = vmatpush1.bf16.msra.mxu0 %v830
        %841 = vmatprep.subr.bf16.mxu0 0
        %842 = vmatpush1.bf16.msra.mxu0 0
        %843 = vmatprep.subr.bf16.mxu0 0
        %844 = vmatpush1.bf16.msra.mxu0 0
        %845 = vmatprep.subr.bf16.mxu0 0
        %846 = vmatpush1.bf16.msra.mxu0 0
        %847 = vmatprep.subr.bf16.mxu0 0
        %848 = vmatpush1.bf16.msra.mxu0 0
        %849 = vmatprep.subr.bf16.mxu0 0
        %850 = vmatpush1.bf16.msra.mxu0 0
        %851 = vmatprep.subr.bf16.mxu0 0
        %852 = vmatpush1.bf16.msra.mxu0 0
        %853 = vmatprep.subr.bf16.mxu0 0
        %854 = vmatpush1.bf16.msra.mxu0 0
        %855 = vmatprep.subr.bf16.mxu0 0
        %856 = vmatpush1.bf16.msra.mxu0 0
        %857 = vmatprep.subr.bf16.mxu0 0
        %858 = vmatpush1.bf16.msra.mxu0 0
        %859 = vmatprep.subr.bf16.mxu0 0
        %860 = vmatpush1.bf16.msra.mxu0 0
        %861 = vmatprep.subr.bf16.mxu0 0
        %862 = vmatpush1.bf16.msra.mxu0 0
        %863 = vmatprep.subr.bf16.mxu0 0
        %864 = vmatpush1.bf16.msra.mxu0 0
        %865 = vmatprep.subr.bf16.mxu0 0
        %866 = vmatpush1.bf16.msra.mxu0 0
        %867 = vmatprep.subr.bf16.mxu0 0
        %868 = vmatpush1.bf16.msra.mxu0 0
        %869 = vmatprep.mubr.bf16.mxu0 0
        %870 = vmatmul.mubr.bf16.gmra.mrb[0].mxu0 %v835
        %v871 = vpop.f32.mrb[0].mxu0
        %v872 = vadd.f32 %v819, %v871
        %v873 = vpop.f32.mrb[0].mxu0
        %v874 = vpop.f32.mrb[0].mxu0
        %v875 = vpop.f32.mrb[0].mxu0
        %876 = vdwg.mxu0
        %v877 = vmul.f32 %v872, 0.25
        %v878 = vpack.c.bf16 %v877, %v877
        %v879 = vld [vmem:[%s665] sm:$0x1]
        %v880 = vld [vmem:[#allocation2] sm:$0xf]
        %v881 = vld [vmem:[#allocation3] sm:$0xf]
        %v883 = vlaneseq
        %v884 = vshrl.u32 %v883, 7
        %v885 = vsub.s32 0, %v884
        %v886 = vrot.slane %v879, %v885
        %vm888 = vcmask 130048
        %v890 = vsel %vm888, %v878, 0
        %v893 = vsel %vm888, %v880, 0
        %895 = vmatprep.subr.bf16.mxu0 0
        %896 = vmatpush1.bf16.xpose.msra.mxu0 %v893
        %897 = vmatprep.subr.bf16.mxu0 0
        %898 = vmatpush1.bf16.xpose.msra.mxu0 0
        %899 = vmatprep.subr.bf16.mxu0 0
        %900 = vmatpush1.bf16.xpose.msra.mxu0 0
        %901 = vmatprep.subr.bf16.mxu0 0
        %902 = vmatpush1.bf16.xpose.msra.mxu0 0
        %903 = vmatprep.subr.bf16.mxu0 0
        %904 = vmatpush1.bf16.xpose.msra.mxu0 0
        %905 = vmatprep.subr.bf16.mxu0 0
        %906 = vmatpush1.bf16.xpose.msra.mxu0 0
        %907 = vmatprep.subr.bf16.mxu0 0
        %908 = vmatpush1.bf16.xpose.msra.mxu0 0
        %909 = vmatprep.subr.bf16.mxu0 0
        %910 = vmatpush1.bf16.xpose.msra.mxu0 0
        %911 = vmatprep.subr.bf16.mxu0 0
        %912 = vmatpush1.bf16.xpose.msra.mxu0 0
        %913 = vmatprep.subr.bf16.mxu0 0
        %914 = vmatpush1.bf16.xpose.msra.mxu0 0
        %915 = vmatprep.subr.bf16.mxu0 0
        %916 = vmatpush1.bf16.xpose.msra.mxu0 0
        %917 = vmatprep.subr.bf16.mxu0 0
        %918 = vmatpush1.bf16.xpose.msra.mxu0 0
        %919 = vmatprep.subr.bf16.mxu0 0
        %920 = vmatpush1.bf16.xpose.msra.mxu0 0
        %921 = vmatprep.subr.bf16.mxu0 0
        %922 = vmatpush1.bf16.xpose.msra.mxu0 0
        %923 = vmatprep.subr.bf16.mxu0 0
        %924 = vmatpush1.bf16.xpose.msra.mxu0 0
        %925 = vmatprep.subr.bf16.mxu0 0
        %926 = vmatpush1.bf16.xpose.msra.mxu0 0
        %927 = vmatprep.mubr.bf16.mxu0 0
        %928 = vmatmul.mubr.bf16.gmra.mrb[0].mxu0 %v890
        %v929 = vpop.f32.mrb[0].mxu0
        %v930 = vadd.f32 %v886, %v929
        %v931 = vpop.f32.mrb[0].mxu0
        %v932 = vpop.f32.mrb[0].mxu0
        %v933 = vpop.f32.mrb[0].mxu0
        %934 = vdwg.mxu0
        %vm935 = vcmask 64512
        %v936 = vsel %vm935, %v930, -inf
        %937 = vmax.xlane.f32.xlu0 %v936
        %v938 = vpop.xlane.xlu0 %937
        %v939 = vsub.f32 %v930, %v938
        %v940 = vmul.f32 %v939, 1.442695
        %v941 = vpow.pop %v940
        %v942 = vsel %vm935, %v941, 0.0
        %943 = vadd.xlane.f32.xlu0 %v942
        %v944 = vpop.xlane.xlu0 %943
        %v945 = vrcp.pop %v944
        %v946 = vmul.f32 %v941, %v945
        %v947 = vpack.c.bf16 %v946, %v946
        %v949 = vsel %vm935, %v947, 0
        %vm951 = vcmask 1043456
        %v953 = vsel %vm951, %v881, 0
        %955 = vmatprep.subr.bf16.mxu0 0
        %956 = vmatpush1.bf16.msra.mxu0 %v953
        %957 = vmatprep.subr.bf16.mxu0 0
        %958 = vmatpush1.bf16.msra.mxu0 0
        %959 = vmatprep.subr.bf16.mxu0 0
        %960 = vmatpush1.bf16.msra.mxu0 0
        %961 = vmatprep.subr.bf16.mxu0 0
        %962 = vmatpush1.bf16.msra.mxu0 0
        %963 = vmatprep.subr.bf16.mxu0 0
        %964 = vmatpush1.bf16.msra.mxu0 0
        %965 = vmatprep.subr.bf16.mxu0 0
        %966 = vmatpush1.bf16.msra.mxu0 0
        %967 = vmatprep.subr.bf16.mxu0 0
        %968 = vmatpush1.bf16.msra.mxu0 0
        %969 = vmatprep.subr.bf16.mxu0 0
        %970 = vmatpush1.bf16.msra.mxu0 0
        %971 = vmatprep.subr.bf16.mxu0 0
        %972 = vmatpush1.bf16.msra.mxu0 0
        %973 = vmatprep.subr.bf16.mxu0 0
        %974 = vmatpush1.bf16.msra.mxu0 0
        %975 = vmatprep.subr.bf16.mxu0 0
        %976 = vmatpush1.bf16.msra.mxu0 0
        %977 = vmatprep.subr.bf16.mxu0 0
        %978 = vmatpush1.bf16.msra.mxu0 0
        %979 = vmatprep.subr.bf16.mxu0 0
        %980 = vmatpush1.bf16.msra.mxu0 0
        %981 = vmatprep.subr.bf16.mxu0 0
        %982 = vmatpush1.bf16.msra.mxu0 0
        %983 = vmatprep.subr.bf16.mxu0 0
        %984 = vmatpush1.bf16.msra.mxu0 0
        %985 = vmatprep.subr.bf16.mxu0 0
        %986 = vmatpush1.bf16.msra.mxu0 0
        %987 = vmatprep.mubr.bf16.mxu0 0
        %988 = vmatmul.mubr.bf16.gmra.mrb[0].mxu0 %v949
        %v989 = vpop.f32.mrb[0].mxu0
        %v990 = vadd.f32 0.0, %v989
        %v991 = vpop.f32.mrb[0].mxu0
        %v992 = vpop.f32.mrb[0].mxu0
        %v993 = vpop.f32.mrb[0].mxu0
        %994 = vdwg.mxu0
        %996 = vrot.lane.b32.xlu0 %v878, 112
        %v997 = vpop.permute.xlu0 %996
        %v999 = vunpack.c.l.b16 %v880
        %v1000 = vpack.c.b16 %v999, %v999
        %1001 = vrot.lane.b32.xlu0 %v1000, 112
        %v1002 = vpop.permute.xlu0 %1001
        %v1004 = vsel %vm888, %v997, 0
        %v1007 = vsel %vm888, %v1002, 0
        %1009 = vmatprep.subr.bf16.mxu0 0
        %1010 = vmatpush1.bf16.xpose.msra.mxu0 %v1007
        %1011 = vmatprep.subr.bf16.mxu0 0
        %1012 = vmatpush1.bf16.xpose.msra.mxu0 0
        %1013 = vmatprep.subr.bf16.mxu0 0
        %1014 = vmatpush1.bf16.xpose.msra.mxu0 0
        %1015 = vmatprep.subr.bf16.mxu0 0
        %1016 = vmatpush1.bf16.xpose.msra.mxu0 0
        %1017 = vmatprep.subr.bf16.mxu0 0
        %1018 = vmatpush1.bf16.xpose.msra.mxu0 0
        %1019 = vmatprep.subr.bf16.mxu0 0
        %1020 = vmatpush1.bf16.xpose.msra.mxu0 0
        %1021 = vmatprep.subr.bf16.mxu0 0
        %1022 = vmatpush1.bf16.xpose.msra.mxu0 0
        %1023 = vmatprep.subr.bf16.mxu0 0
        %1024 = vmatpush1.bf16.xpose.msra.mxu0 0
        %1025 = vmatprep.subr.bf16.mxu0 0
        %1026 = vmatpush1.bf16.xpose.msra.mxu0 0
        %1027 = vmatprep.subr.bf16.mxu0 0
        %1028 = vmatpush1.bf16.xpose.msra.mxu0 0
        %1029 = vmatprep.subr.bf16.mxu0 0
        %1030 = vmatpush1.bf16.xpose.msra.mxu0 0
        %1031 = vmatprep.subr.bf16.mxu0 0
        %1032 = vmatpush1.bf16.xpose.msra.mxu0 0
        %1033 = vmatprep.subr.bf16.mxu0 0
        %1034 = vmatpush1.bf16.xpose.msra.mxu0 0
        %1035 = vmatprep.subr.bf16.mxu0 0
        %1036 = vmatpush1.bf16.xpose.msra.mxu0 0
        %1037 = vmatprep.subr.bf16.mxu0 0
        %1038 = vmatpush1.bf16.xpose.msra.mxu0 0
        %1039 = vmatprep.subr.bf16.mxu0 0
        %1040 = vmatpush1.bf16.xpose.msra.mxu0 0
        %1041 = vmatprep.mubr.bf16.mxu0 0
        %1042 = vmatmul.mubr.bf16.gmra.mrb[0].mxu0 %v1004
        %v1043 = vpop.f32.mrb[0].mxu0
        %v1044 = vadd.f32 %v886, %v1043
        %v1045 = vpop.f32.mrb[0].mxu0
        %v1046 = vpop.f32.mrb[0].mxu0
        %v1047 = vpop.f32.mrb[0].mxu0
        %1048 = vdwg.mxu0
        %v1049 = vsel %vm935, %v1044, -inf
        %1050 = vmax.xlane.f32.xlu0 %v1049
        %v1051 = vpop.xlane.xlu0 %1050
        %v1052 = vsub.f32 %v1044, %v1051
        %v1053 = vmul.f32 %v1052, 1.442695
        %v1054 = vpow.pop %v1053
        %v1055 = vsel %vm935, %v1054, 0.0
        %1056 = vadd.xlane.f32.xlu0 %v1055
        %v1057 = vpop.xlane.xlu0 %1056
        %v1058 = vrcp.pop %v1057
        %v1059 = vmul.f32 %v1054, %v1058
        %v1060 = vpack.c.bf16 %v1059, %v1059
        %v1062 = vunpack.c.l.b16 %v881
        %v1063 = vpack.c.b16 %v1062, %v1062
        %1064 = vrot.lane.b32.xlu0 %v1063, 112
        %v1065 = vpop.permute.xlu0 %1064
        %v1067 = vsel %vm935, %v1060, 0
        %v1070 = vsel %vm951, %v1065, 0
        %1072 = vmatprep.subr.bf16.mxu0 0
        %1073 = vmatpush1.bf16.msra.mxu0 %v1070
        %1074 = vmatprep.subr.bf16.mxu0 0
        %1075 = vmatpush1.bf16.msra.mxu0 0
        %1076 = vmatprep.subr.bf16.mxu0 0
        %1077 = vmatpush1.bf16.msra.mxu0 0
        %1078 = vmatprep.subr.bf16.mxu0 0
        %1079 = vmatpush1.bf16.msra.mxu0 0
        %1080 = vmatprep.subr.bf16.mxu0 0
        %1081 = vmatpush1.bf16.msra.mxu0 0
        %1082 = vmatprep.subr.bf16.mxu0 0
        %1083 = vmatpush1.bf16.msra.mxu0 0
        %1084 = vmatprep.subr.bf16.mxu0 0
        %1085 = vmatpush1.bf16.msra.mxu0 0
        %1086 = vmatprep.subr.bf16.mxu0 0
        %1087 = vmatpush1.bf16.msra.mxu0 0
        %1088 = vmatprep.subr.bf16.mxu0 0
        %1089 = vmatpush1.bf16.msra.mxu0 0
        %1090 = vmatprep.subr.bf16.mxu0 0
        %1091 = vmatpush1.bf16.msra.mxu0 0
        %1092 = vmatprep.subr.bf16.mxu0 0
        %1093 = vmatpush1.bf16.msra.mxu0 0
        %1094 = vmatprep.subr.bf16.mxu0 0
        %1095 = vmatpush1.bf16.msra.mxu0 0
        %1096 = vmatprep.subr.bf16.mxu0 0
        %1097 = vmatpush1.bf16.msra.mxu0 0
        %1098 = vmatprep.subr.bf16.mxu0 0
        %1099 = vmatpush1.bf16.msra.mxu0 0
        %1100 = vmatprep.subr.bf16.mxu0 0
        %1101 = vmatpush1.bf16.msra.mxu0 0
        %1102 = vmatprep.subr.bf16.mxu0 0
        %1103 = vmatpush1.bf16.msra.mxu0 0
        %1104 = vmatprep.mubr.bf16.mxu0 0
        %1105 = vmatmul.mubr.bf16.gmra.mrb[0].mxu0 %v1067
        %v1106 = vpop.f32.mrb[0].mxu0
        %v1107 = vadd.f32 0.0, %v1106
        %v1108 = vpop.f32.mrb[0].mxu0
        %v1109 = vpop.f32.mrb[0].mxu0
        %v1110 = vpop.f32.mrb[0].mxu0
        %1111 = vdwg.mxu0
        %1113 = vrot.lane.b32.xlu0 %v1107, 16
        %v1114 = vpop.permute.xlu0 %1113
        %v1116 = vsel %vm888, %v990, %v1114
        %1117 = vst.msk [vmem:[%s651] sm:$0xff] %vm833, %v1116
        %v1118 = vpack.c.bf16 %v1116, %v1116
        %v1119 = vld [vmem:[#allocation7] sm:$0xf]
        %v1120 = vld [vmem:[#allocation7 + $0x4] sm:$0xf]
        %v1121 = vld [vmem:[#allocation7 + $0x8] sm:$0xf]
        %v1122 = vld [vmem:[#allocation7 + $0xc] sm:$0xf]
        %v1123 = vld [vmem:[#allocation9] sm:$0x1]
        %v1125 = vlaneseq
        %v1126 = vshrl.u32 %v1125, 7
        %v1127 = vsub.s32 0, %v1126
        %v1128 = vrot.slane %v1123, %v1127
        %v1134 = vunpack.c.l.b16 %v1119
        %v1135 = vunpack.c.l.b16 %v1120
        %v1136 = vunpack.c.l.b16 %v1121
        %v1137 = vunpack.c.l.b16 %v1122
        %v1138 = vpack.c.b16 %v1135, %v1134
        %v1139 = vpack.c.b16 %v1137, %v1136
        %v1143 = vsel %vm833, %v1118, 0
        %1145 = vmatprep.subr.bf16.mxu0 0
        %1146 = vmatpush1.bf16.msra.mxu0 %v1138
        %1147 = vmatprep.subr.bf16.mxu0 0
        %1148 = vmatpush1.bf16.msra.mxu0 %v1139
        %1149 = vmatprep.subr.bf16.mxu0 0
        %1150 = vmatpush1.bf16.msra.mxu0 0
        %1151 = vmatprep.subr.bf16.mxu0 0
        %1152 = vmatpush1.bf16.msra.mxu0 0
        %1153 = vmatprep.subr.bf16.mxu0 0
        %1154 = vmatpush1.bf16.msra.mxu0 0
        %1155 = vmatprep.subr.bf16.mxu0 0
        %1156 = vmatpush1.bf16.msra.mxu0 0
        %1157 = vmatprep.subr.bf16.mxu0 0
        %1158 = vmatpush1.bf16.msra.mxu0 0
        %1159 = vmatprep.subr.bf16.mxu0 0
        %1160 = vmatpush1.bf16.msra.mxu0 0
        %1161 = vmatprep.subr.bf16.mxu0 0
        %1162 = vmatpush1.bf16.msra.mxu0 0
        %1163 = vmatprep.subr.bf16.mxu0 0
        %1164 = vmatpush1.bf16.msra.mxu0 0
        %1165 = vmatprep.subr.bf16.mxu0 0
        %1166 = vmatpush1.bf16.msra.mxu0 0
        %1167 = vmatprep.subr.bf16.mxu0 0
        %1168 = vmatpush1.bf16.msra.mxu0 0
        %1169 = vmatprep.subr.bf16.mxu0 0
        %1170 = vmatpush1.bf16.msra.mxu0 0
        %1171 = vmatprep.subr.bf16.mxu0 0
        %1172 = vmatpush1.bf16.msra.mxu0 0
        %1173 = vmatprep.subr.bf16.mxu0 0
        %1174 = vmatpush1.bf16.msra.mxu0 0
        %1175 = vmatprep.subr.bf16.mxu0 0
        %1176 = vmatpush1.bf16.msra.mxu0 0
        %1177 = vmatprep.mubr.bf16.mxu0 0
        %1178 = vmatmul.mubr.bf16.gmra.mrb[0].mxu0 %v1143
        %v1179 = vpop.f32.mrb[0].mxu0
        %v1180 = vadd.f32 %v1128, %v1179
        %v1181 = vpop.f32.mrb[0].mxu0
        %v1182 = vpop.f32.mrb[0].mxu0
        %v1183 = vpop.f32.mrb[0].mxu0
        %1184 = vdwg.mxu0
        %v1185 = vadd.f32 %v1180, %v808
        %v1186 = vsel %vm833, %v1185, 0.0
        %1187 = vadd.xlane.f32.xlu0 %v1186
        %v1188 = vpop.xlane.xlu0 %1187
        %v1189 = vrcp.pop 32.0
        %v1190 = vmul.f32 %v1188, %v1189
        %v1191 = vsub.f32 %v1185, %v1190
        %v1192 = vmul.f32 %v1191, %v1191
        %v1193 = vsel %vm833, %v1192, 0.0
        %1194 = vadd.xlane.f32.xlu0 %v1193
        %v1195 = vpop.xlane.xlu0 %1194
        %v1196 = vmul.f32 %v1195, %v1189
        %v1197 = vadd.f32 %v1196, 1e-05
        %v1198 = vrsqrt.pop %v1197
        %v1199 = vmul.f32 %v1191, %v1198
        %v1200 = vpack.c.bf16 %v1199, %v1199
        %v1201 = vld [vmem:[#allocation10] sm:$0xf]
        %v1202 = vld [vmem:[#allocation10 + $0x4] sm:$0xf]
        %v1203 = vld [vmem:[#allocation10 + $0x8] sm:$0xf]
        %v1204 = vld [vmem:[#allocation10 + $0xc] sm:$0xf]
        %v1205 = vld [vmem:[#allocation12] sm:$0x1]
        %v1207 = vlaneseq
        %v1208 = vshrl.u32 %v1207, 7
        %v1209 = vsub.s32 0, %v1208
        %v1210 = vrot.slane %v1205, %v1209
        %v1216 = vunpack.c.l.b16 %v1201
        %v1217 = vunpack.c.l.b16 %v1202
        %v1218 = vunpack.c.l.b16 %v1203
        %v1219 = vunpack.c.l.b16 %v1204
        %v1220 = vpack.c.b16 %v1217, %v1216
        %v1221 = vpack.c.b16 %v1219, %v1218
        %v1225 = vsel %vm833, %v1200, 0
        %1227 = vmatprep.subr.bf16.mxu0 0
        %1228 = vmatpush1.bf16.msra.mxu0 %v1220
        %1229 = vmatprep.subr.bf16.mxu0 0
        %1230 = vmatpush1.bf16.msra.mxu0 %v1221
        %1231 = vmatprep.subr.bf16.mxu0 0
        %1232 = vmatpush1.bf16.msra.mxu0 0
        %1233 = vmatprep.subr.bf16.mxu0 0
        %1234 = vmatpush1.bf16.msra.mxu0 0
        %1235 = vmatprep.subr.bf16.mxu0 0
        %1236 = vmatpush1.bf16.msra.mxu0 0
        %1237 = vmatprep.subr.bf16.mxu0 0
        %1238 = vmatpush1.bf16.msra.mxu0 0
        %1239 = vmatprep.subr.bf16.mxu0 0
        %1240 = vmatpush1.bf16.msra.mxu0 0
        %1241 = vmatprep.subr.bf16.mxu0 0
        %1242 = vmatpush1.bf16.msra.mxu0 0
        %1243 = vmatprep.subr.bf16.mxu0 0
        %1244 = vmatpush1.bf16.msra.mxu0 0
        %1245 = vmatprep.subr.bf16.mxu0 0
        %1246 = vmatpush1.bf16.msra.mxu0 0
        %1247 = vmatprep.subr.bf16.mxu0 0
        %1248 = vmatpush1.bf16.msra.mxu0 0
        %1249 = vmatprep.subr.bf16.mxu0 0
        %1250 = vmatpush1.bf16.msra.mxu0 0
        %1251 = vmatprep.subr.bf16.mxu0 0
        %1252 = vmatpush1.bf16.msra.mxu0 0
        %1253 = vmatprep.subr.bf16.mxu0 0
        %1254 = vmatpush1.bf16.msra.mxu0 0
        %1255 = vmatprep.subr.bf16.mxu0 0
        %1256 = vmatpush1.bf16.msra.mxu0 0
        %1257 = vmatprep.subr.bf16.mxu0 0
        %1258 = vmatpush1.bf16.msra.mxu0 0
        %1259 = vmatprep.mubr.bf16.mxu0 0
        %1260 = vmatmul.mubr.bf16.gmra.mrb[0].mxu0 %v1225
        %v1261 = vpop.f32.mrb[0].mxu0
        %v1262 = vadd.f32 %v1210, %v1261
        %v1263 = vpop.f32.mrb[0].mxu0
        %v1264 = vpop.f32.mrb[0].mxu0
        %v1265 = vpop.f32.mrb[0].mxu0
        %1266 = vdwg.mxu0
        %v1267 = vmax.f32 %v1262, 0.0
        %v1268 = vpack.c.bf16 %v1267, %v1267
        %v1269 = vld [vmem:[%s13] sm:$0xf]
        %v1270 = vld [vmem:[%s13 + $0x4] sm:$0xf]
        %v1271 = vld [vmem:[%s13 + $0x8] sm:$0xf]
        %v1272 = vld [vmem:[%s13 + $0xc] sm:$0xf]
        %v1273 = vld [vmem:[%s13 + $0x10] sm:$0xf]
        %v1274 = vld [vmem:[%s13 + $0x14] sm:$0xf]
        %v1275 = vld [vmem:[%s13 + $0x18] sm:$0xf]
        %v1276 = vld [vmem:[%s13 + $0x1c] sm:$0xf]
        %v1277 = vld [vmem:[#allocation13] sm:$0x1]
        %v1279 = vlaneseq
        %v1280 = vshrl.u32 %v1279, 7
        %v1281 = vsub.s32 0, %v1280
        %v1282 = vrot.slane %v1277, %v1281
        %v1292 = vunpack.c.l.b16 %v1269
        %v1293 = vunpack.c.l.b16 %v1270
        %v1294 = vunpack.c.l.b16 %v1271
        %v1295 = vunpack.c.l.b16 %v1272
        %v1296 = vunpack.c.l.b16 %v1273
        %v1297 = vunpack.c.l.b16 %v1274
        %v1298 = vunpack.c.l.b16 %v1275
        %v1299 = vunpack.c.l.b16 %v1276
        %v1300 = vpack.c.b16 %v1293, %v1292
        %v1301 = vpack.c.b16 %v1295, %v1294
        %v1302 = vpack.c.b16 %v1297, %v1296
        %v1303 = vpack.c.b16 %v1299, %v1298
        %vm1308 = vcmask 523264
        %v1310 = vsel %vm1308, %v1268, 0
        %1312 = vmatprep.subr.bf16.mxu0 0
        %1313 = vmatpush1.bf16.msra.mxu0 %v1300
        %1314 = vmatprep.subr.bf16.mxu0 0
        %1315 = vmatpush1.bf16.msra.mxu0 %v1301
        %1316 = vmatprep.subr.bf16.mxu0 0
        %1317 = vmatpush1.bf16.msra.mxu0 %v1302
        %1318 = vmatprep.subr.bf16.mxu0 0
        %1319 = vmatpush1.bf16.msra.mxu0 %v1303
        %1320 = vmatprep.subr.bf16.mxu0 0
        %1321 = vmatpush1.bf16.msra.mxu0 0
        %1322 = vmatprep.subr.bf16.mxu0 0
        %1323 = vmatpush1.bf16.msra.mxu0 0
        %1324 = vmatprep.subr.bf16.mxu0 0
        %1325 = vmatpush1.bf16.msra.mxu0 0
        %1326 = vmatprep.subr.bf16.mxu0 0
        %1327 = vmatpush1.bf16.msra.mxu0 0
        %1328 = vmatprep.subr.bf16.mxu0 0
        %1329 = vmatpush1.bf16.msra.mxu0 0
        %1330 = vmatprep.subr.bf16.mxu0 0
        %1331 = vmatpush1.bf16.msra.mxu0 0
        %1332 = vmatprep.subr.bf16.mxu0 0
        %1333 = vmatpush1.bf16.msra.mxu0 0
        %1334 = vmatprep.subr.bf16.mxu0 0
        %1335 = vmatpush1.bf16.msra.mxu0 0
        %1336 = vmatprep.subr.bf16.mxu0 0
        %1337 = vmatpush1.bf16.msra.mxu0 0
        %1338 = vmatprep.subr.bf16.mxu0 0
        %1339 = vmatpush1.bf16.msra.mxu0 0
        %1340 = vmatprep.subr.bf16.mxu0 0
        %1341 = vmatpush1.bf16.msra.mxu0 0
        %1342 = vmatprep.subr.bf16.mxu0 0
        %1343 = vmatpush1.bf16.msra.mxu0 0
        %1344 = vmatprep.mubr.bf16.mxu0 0
        %1345 = vmatmul.mubr.bf16.gmra.mrb[0].mxu0 %v1310
        %v1346 = vpop.f32.mrb[0].mxu0
        %v1347 = vadd.f32 %v1282, %v1346
        %v1348 = vpop.f32.mrb[0].mxu0
        %v1349 = vpop.f32.mrb[0].mxu0
        %v1350 = vpop.f32.mrb[0].mxu0
        %1351 = vdwg.mxu0
        %v1352 = vadd.f32 %v808, %v1347
        %v1353 = vsel %vm833, %v1352, 0.0
        %1354 = vadd.xlane.f32.xlu0 %v1353
        %v1355 = vpop.xlane.xlu0 %1354
        %v1356 = vmul.f32 %v1355, %v1189
        %v1357 = vsub.f32 %v1352, %v1356
        %v1358 = vmul.f32 %v1357, %v1357
        %v1359 = vsel %vm833, %v1358, 0.0
        %1360 = vadd.xlane.f32.xlu0 %v1359
        %v1361 = vpop.xlane.xlu0 %1360
        %v1362 = vmul.f32 %v1361, %v1189
        %v1363 = vadd.f32 %v1362, 1e-05
        %v1364 = vrsqrt.pop %v1363
        %v1365 = vmul.f32 %v1357, %v1364
        %1366 = vst.msk [vmem:[%s644] sm:$0xff] %vm833, %v1365
        %s1367 = sand.u32 %s392, 1
        %s1368 = scalar_lea.sflag [#allocation6], %s1367
        %s1369 = sand.u32 %s392, 1
        %s1370 = smul.addr %s1369, 8
        %s1371 = scalar_lea.vmem [#allocation15], %s1370
        %s1372 = sand.u32 %s420, 1
        %s1373 = scalar_lea.sflag [#allocation17], %s1372
        %s1374 = sand.u32 %s420, 1
        %s1375 = smul.addr %s1374, 8
        %s1376 = scalar_lea.vmem [#allocation16], %s1375
        // Predicated region
        $region109: #{encoder_layer_forward.1} parent=79 // pred_check
          %p1377 = pneg %p402
        $region110: #{encoder_layer_forward.1} parent=79 // pred_check_branch
          %1379 = sbr.rel (%p1377) target = $region112
        $region111: #{encoder_layer_forward.1} parent=79 // pred_region
          %s1381 = ssub.s32 128, 128
          %1382 = vsyncadd %s1368, %s1381
          %s1383 = sadd.s32 %s43, %s42
          %s1384 = smul.addr %s1383, 128
          %s1385 = scalar_lea.hbm %s15, %s1384
          %s1387 = sshll.u32 %s1371, 4
          %s1388 = int_to_ptr.vmem [resolvable:$true] %s1387
          %1390 = dma.vmem_to_hbm [thread:$0]  %s1388, 128, %s1385, %s1368
        $region112: #{encoder_layer_forward.1} parent=79 // pred_fallthru
          _
        // Predicated region
        $region113: #{encoder_layer_forward.1} parent=79 // pred_check
          %p1391 = pneg %p430
        $region114: #{encoder_layer_forward.1} parent=79 // pred_check_branch
          %1393 = sbr.rel (%p1391) target = $region116
        $region115: #{encoder_layer_forward.1} parent=79 // pred_region
          %s1395 = ssub.s32 128, 128
          %1396 = vsyncadd %s1373, %s1395
          %s1397 = sadd.s32 %s43, %s42
          %s1398 = smul.addr %s1397, 128
          %s1399 = scalar_lea.hbm %s16, %s1398
          %s1401 = sshll.u32 %s1376, 4
          %s1402 = int_to_ptr.vmem [resolvable:$true] %s1401
          %1404 = dma.vmem_to_hbm [thread:$0]  %s1402, 128, %s1399, %s1373
        $region116: #{encoder_layer_forward.1} parent=79 // pred_fallthru
          _
      $region80: #{encoder_layer_forward.1} parent=5 // pred_fallthru
        _
      %p1405 = scmp.le.s32.totalorder 2, %s33
      // Predicated region
      $region117: #{encoder_layer_forward.1} parent=5 // pred_check
        %p1406 = pneg %p1405
      $region118: #{encoder_layer_forward.1} parent=5 // pred_check_branch
        %1408 = sbr.rel (%p1406) target = $region120
      $region119: #{encoder_layer_forward.1} parent=5 // pred_region
        %s1409 = ssub.s32 %s33, 2
        // Predicated region
        $region121: #{encoder_layer_forward.1} parent=119 // pred_check
          %p1410 = pneg %p408
        $region122: #{encoder_layer_forward.1} parent=119 // pred_check_branch
          %1412 = sbr.rel (%p1410) target = $region124
        $region123: #{encoder_layer_forward.1} parent=119 // pred_region
          %s1413 = sand.u32 %s393, 1
          %s1414 = scalar_lea.sflag [#allocation6], %s1413
          %s1415 = sand.u32 %s393, 1
          %s1416 = smul.addr %s1415, 8
          %s1417 = scalar_lea.vmem [#allocation15], %s1416
          %1418 = dma.done %s1414, 128
        $region124: #{encoder_layer_forward.1} parent=119 // pred_fallthru
          _
        // Predicated region
        $region125: #{encoder_layer_forward.1} parent=119 // pred_check
          %p1419 = pneg %p436
        $region126: #{encoder_layer_forward.1} parent=119 // pred_check_branch
          %1421 = sbr.rel (%p1419) target = $region128
        $region127: #{encoder_layer_forward.1} parent=119 // pred_region
          %s1422 = sand.u32 %s421, 1
          %s1423 = scalar_lea.sflag [#allocation17], %s1422
          %s1424 = sand.u32 %s421, 1
          %s1425 = smul.addr %s1424, 8
          %s1426 = scalar_lea.vmem [#allocation16], %s1425
          %1427 = dma.done %s1423, 128
        $region128: #{encoder_layer_forward.1} parent=119 // pred_fallthru
          _
      $region120: #{encoder_layer_forward.1} parent=5 // pred_fallthru
        _
    $region6: #{encoder_layer_forward.1} parent=1 // loop_footer
      %s37 = sadd.s32 1, %s33
    $region7: #{encoder_layer_forward.1} parent=1 // loop_footer_branch
      %32 = sbr.rel target = $region3
    $region8: #{encoder_layer_forward.1} parent=1 // loop_exit
      _
    %1428 = vsyncpa [#allocation5], 1
    %s1429 = scalar_lea.sflag [#allocation5], 1
    %1430 = vsyncpa %s1429, 1
    %1431 = vsyncpa [#allocation8], 1
    %1432 = vsyncpa [#allocation11], 1
    %1433 = vsyncpa [#allocation14], 1
    %1434 = vsyncpa [#allocation6], 1
    %s1435 = scalar_lea.sflag [#allocation6], 1
    %1436 = vsyncpa %s1435, 1
    %1437 = vsyncpa [#allocation17], 1
    %s1438 = scalar_lea.sflag [#allocation17], 1
    %1439 = vsyncpa %s1438, 1

</llo_original>
